<compile_context>
chip_gen: v7x
topology: tpu7x:2x2x1
jax: 0.10.0
libtpu: 0.0.40
codegen_flags: <defaults>
</compile_context>

<pallas_src>
import functools

import jax
import jax.numpy as jnp
from jax.experimental import pallas as pl
from jax.experimental.pallas import tpu as pltpu

MATMUL_DTYPE = jnp.bfloat16   # MXU operand dtype; accumulation stays f32.


def decoder_step_kernel(*refs, num_layers, max_step, rnn_units):
    """Fused decoder step for one batch tile (grid over batch tiles).

    Ref order:
      inputs : x, sup_blk, h_packed, [w_l, b_l] * L, wp, bp
      outputs: out, h_new_packed
    Everything is 2-D: rows = batch_tile * num_nodes on sublanes, feats on lanes.
    """
    U = rnn_units
    idx = 0
    x_ref = refs[idx]; idx += 1
    sup_ref = refs[idx]; idx += 1
    h_ref = refs[idx]; idx += 1
    layer_refs = []
    for _ in range(num_layers):
        layer_refs.append((refs[idx], refs[idx + 1])); idx += 2
    wp_ref = refs[idx]; idx += 1
    bp_ref = refs[idx]; idx += 1
    out_ref = refs[idx]; idx += 1
    hnew_ref = refs[idx]; idx += 1

    sup = sup_ref[...]              # (rows, rows) bf16 block-diagonal support
    z = x_ref[...]                  # (rows, Din0) f32
    h_all = h_ref[...]              # (rows, L*U) f32

    def diffuse(t):
        # One application of the support: bf16 MXU operands, f32 accumulate.
        return jnp.dot(sup, t.astype(MATMUL_DTYPE),
                       preferred_element_type=jnp.float32)

    def chebyshev(t):
        # [T_0 t, ..., T_K t]; recurrence stays in f32.
        feats = [t]
        if max_step >= 1:
            t0, t1 = t, diffuse(t)
            feats.append(t1)
            for _ in range(2, max_step + 1):
                t2 = 2.0 * diffuse(t1) - t0
                feats.append(t2)
                t0, t1 = t1, t2
        return feats

    new_h = []
    for layer in range(num_layers):
        w_ref, b_ref = layer_refs[layer]
        w = w_ref[...]              # (F_l, 3U) bf16, rows = [Tx_0..Tx_K, Th_0..Th_K]
        b = b_ref[...]              # (1, 3U) f32
        h = h_all[:, layer * U:(layer + 1) * U]

        tx = chebyshev(z)           # reused by gates AND candidate
        th = chebyshev(h)

        # Single wide-contraction gate matmul (r|u fused in the output lanes).
        a_g = jnp.concatenate(tx + th, axis=1).astype(MATMUL_DTYPE)
        ru = jax.nn.sigmoid(
            jnp.dot(a_g, w[:, :2 * U], preferred_element_type=jnp.float32)
            + b[:, :2 * U])
        r = ru[:, :U]
        u = ru[:, U:]

        trh = chebyshev(r * h)      # only the h-half is re-diffused
        a_c = jnp.concatenate(tx + trh, axis=1).astype(MATMUL_DTYPE)
        c = jnp.tanh(
            jnp.dot(a_c, w[:, 2 * U:], preferred_element_type=jnp.float32)
            + b[:, 2 * U:])

        h_new = u * h + (1.0 - u) * c      # GRU update, f32
        new_h.append(h_new)
        z = h_new

    # One lane-packed hidden store + fused projection (no extra launch).
    hnew_ref[...] = jnp.concatenate(new_h, axis=1)
    out_ref[...] = (jnp.dot(z.astype(MATMUL_DTYPE), wp_ref[...],
                            preferred_element_type=jnp.float32) + bp_ref[...])


def decoder_forward(x, h_packed, sup, layer_params, wp, bp, *,
                    rnn_units, max_step, batch_tile=None):
    """x: (B, N, Din0) f32; h_packed: (B, N, L*U) f32. One fused pallas_call."""
    B, N, din = x.shape
    L = len(layer_params)
    U = rnn_units
    O = wp.shape[-1]

    # ---- batch tiling --------------------------------------------------------
    if batch_tile is None:
        # Whole batch in one grid step when small (v5e/v6e); otherwise target
        # ~128 stacked rows so the MXU LHS is full and multiple grid steps stay
        # available for v7x's two TensorCores ("parallel" grid axis).
        bt = B if B * N <= 1024 else max(1, min(B, 128 // max(N, 1)))
    else:
        bt = max(1, min(batch_tile, B))
    if bt != B and (bt * N) % 8 != 0:
        bt = B                       # full-array block sidesteps the (8,128) rule
    b_pad = ((B + bt - 1) // bt) * bt
    if b_pad != B:
        pad = b_pad - B
        x = jnp.concatenate([x, jnp.zeros((pad, N, din), x.dtype)], axis=0)
        h_packed = jnp.concatenate(
            [h_packed, jnp.zeros((pad, N, L * U), h_packed.dtype)], axis=0)

    rows = bt * N
    grid_steps = b_pad // bt
    x2 = x.reshape(b_pad * N, din)
    h2 = h_packed.reshape(b_pad * N, L * U)

    # Block-diagonal support so the Chebyshev diffusion of the whole batch tile
    # is a single (rows, rows) @ (rows, D) MXU matmul (constant-folded by XLA).
    sup_blk = jnp.kron(jnp.eye(bt, dtype=jnp.float32),
                       sup.astype(jnp.float32)).astype(MATMUL_DTYPE)

    def bmap(i):
        return (i, 0)

    def cmap(i):
        return (0, 0)

    inputs = [x2, sup_blk, h2]
    in_specs = [
        pl.BlockSpec((rows, din), bmap),
        pl.BlockSpec(sup_blk.shape, cmap),
        pl.BlockSpec((rows, L * U), bmap),
    ]
    for w, b in layer_params:
        inputs += [w, b]
        in_specs += [pl.BlockSpec(w.shape, cmap), pl.BlockSpec(b.shape, cmap)]
    inputs += [wp, bp]
    in_specs += [pl.BlockSpec(wp.shape, cmap), pl.BlockSpec(bp.shape, cmap)]

    out_shape = (
        jax.ShapeDtypeStruct((b_pad * N, O), jnp.float32),
        jax.ShapeDtypeStruct((b_pad * N, L * U), jnp.float32),
    )
    out_specs = (
        pl.BlockSpec((rows, O), bmap),
        pl.BlockSpec((rows, L * U), bmap),
    )

    # ---- advisory cost estimate ----------------------------------------------
    flops = 0.0
    trans = 0.0
    for layer, (w, _) in enumerate(layer_params):
        din_l = din if layer == 0 else U
        f_l = w.shape[0]
        flops += 2.0 * rows * rows * max_step * (din_l + 2 * U)  # diffusion
        flops += 2.0 * rows * f_l * 3 * U                        # gates + candidate
        trans += 3.0 * rows * U                                  # sigmoid + tanh
    flops += 2.0 * rows * U * O                                  # projection
    flops *= grid_steps
    trans *= grid_steps
    bytes_accessed = sum(int(a.size) * a.dtype.itemsize for a in inputs)
    bytes_accessed += (b_pad * N) * (O + L * U) * 4              # outputs (f32)

    # ---- VMEM limit only when the footprint actually needs it ----------------
    block_bytes = (rows * din + 2 * rows * L * U + rows * O) * 4
    block_bytes += int(sup_blk.size) * 2
    block_bytes += sum(int(w.size) * 2 + int(b.size) * 4 for w, b in layer_params)
    block_bytes += int(wp.size) * 2 + int(bp.size) * 4
    work_bytes = 8 * rows * (max_step + 1) * (din + 2 * U) * 4
    vmem_needed = 2 * block_bytes + work_bytes
    vmem_limit = None
    if vmem_needed > 24 * 1024 * 1024:
        vmem_limit = int(min(vmem_needed * 1.5, 100 * 1024 * 1024))

    kernel = functools.partial(
        decoder_step_kernel, num_layers=L, max_step=max_step, rnn_units=U)

    out2, hnew2 = pl.pallas_call(
        kernel,
        out_shape=out_shape,
        grid=(grid_steps,),
        in_specs=in_specs,
        out_specs=out_specs,
        input_output_aliases={2: 1},     # hidden-state buffer reused in place
        compiler_params=pltpu.CompilerParams(
            dimension_semantics=("parallel",),
            vmem_limit_bytes=vmem_limit),
        cost_estimate=pl.CostEstimate(
            flops=int(flops), transcendentals=int(trans),
            bytes_accessed=int(bytes_accessed)),
    )(*inputs)

    out2 = out2[:B * N].reshape(B, N, O)
    hnew2 = hnew2[:B * N].reshape(B, N, L * U)
    return out2, hnew2


class DecoderModelPallas:
    """JAX/Pallas re-implementation of SGODE-RNN DecoderModel (use_ode_for_gru=False)."""

    def __init__(self, key, *, num_nodes, rnn_units, output_dim,
                 num_rnn_layers, max_diffusion_step):
        self.num_nodes = num_nodes
        self.rnn_units = rnn_units
        self.output_dim = output_dim
        self.num_rnn_layers = num_rnn_layers
        self.max_diffusion_step = max_diffusion_step
        self.hidden_state_size = num_nodes * rnn_units

        num_matrices = max_diffusion_step + 1   # filter_type='laplacian' -> 1 support

        # TODO(synk): the DCGRUCell graph adjacency is not given in the prompt; the
        # diffusion support is a deterministic synthetic scaled Laplacian
        # (lambda_max ~= 2), matching standard DCRNN semantics.
        key, k_adj = jax.random.split(key)
        a = jax.random.uniform(k_adj, (num_nodes, num_nodes), dtype=jnp.float32)
        a = 0.5 * (a + a.T)
        d_inv_sqrt = 1.0 / jnp.sqrt(jnp.sum(a, axis=1))
        lap = jnp.eye(num_nodes, dtype=jnp.float32) - (
            d_inv_sqrt[:, None] * a * d_inv_sqrt[None, :])
        self.support = lap - jnp.eye(num_nodes, dtype=jnp.float32)  # 2L/2 - I

        # Per-layer gconv params packed into one bf16 weight slab + one f32 bias:
        # rows ordered [Tx_0..Tx_K, Th_0..Th_K], output lanes [r | u | c].
        # NOTE: internally consistent with the kernel's activation packing, but
        # not byte-compatible with a PyTorch DCGRU checkpoint's flatten order.
        self.layer_params = []
        U = rnn_units
        for layer in range(num_rnn_layers):
            in_dim = output_dim if layer == 0 else rnn_units
            feat = num_matrices * (in_dim + U)
            key, kw = jax.random.split(key)
            w = 0.1 * jax.random.normal(kw, (feat, 3 * U), jnp.float32)
            b = jnp.concatenate(
                [jnp.full((1, 2 * U), 1.0, jnp.float32),   # bias_start = 1.0 (gates)
                 jnp.zeros((1, U), jnp.float32)], axis=1)
            self.layer_params.append((w.astype(MATMUL_DTYPE), b))

        key, kp = jax.random.split(key)
        self.wp = (0.1 * jax.random.normal(
            kp, (rnn_units, output_dim), jnp.float32)).astype(MATMUL_DTYPE)
        self.bp = jnp.zeros((1, output_dim), jnp.float32)

        self._forward = jax.jit(self._forward_impl)

    def _forward_impl(self, inputs, hidden_state):
        B = inputs.shape[0]
        N, U, O = self.num_nodes, self.rnn_units, self.output_dim
        L = self.num_rnn_layers
        x = inputs.reshape(B, N, O).astype(jnp.float32)
        h = jnp.transpose(
            hidden_state.reshape(L, B, N, U).astype(jnp.float32),
            (1, 2, 0, 3)).reshape(B, N, L * U)
        out, hnew = decoder_forward(
            x, h, self.support, self.layer_params, self.wp, self.bp,
            rnn_units=U, max_step=self.max_diffusion_step)
        output = out.reshape(B, N * O)
        new_hidden = jnp.transpose(
            hnew.reshape(B, N, L, U), (2, 0, 1, 3)).reshape(L, B, N * U)
        return output, new_hidden

    def __call__(self, inputs, hidden_state=None):
        """
        inputs:       (B, num_nodes * output_dim)
        hidden_state: (num_layers, B, num_nodes * rnn_units) or None
        returns: (output (B, num_nodes*output_dim),
                  hidden (num_layers, B, num_nodes*rnn_units))
        """
        B = inputs.shape[0]
        if hidden_state is None:
            hidden_state = jnp.zeros(
                (self.num_rnn_layers, B, self.hidden_state_size), jnp.float32)
        return self._forward(inputs, hidden_state)


if __name__ == "__main__":
    # Small, forward-consistent shapes.
    B = 2            # batch
    N = 16           # num_nodes
    U = 32           # rnn_units
    O = 1            # output_dim
    L = 2            # num_rnn_layers
    K = 2            # max_diffusion_step

    key = jax.random.PRNGKey(0)
    k_model, k_in, k_h = jax.random.split(key, 3)

    model = DecoderModelPallas(
        k_model,
        num_nodes=N,
        rnn_units=U,
        output_dim=O,
        num_rnn_layers=L,
        max_diffusion_step=K,
    )

    inputs = jax.random.normal(k_in, (B, N * O), jnp.float32)
    hidden = jax.random.normal(k_h, (L, B, N * U), jnp.float32)

    out, new_hidden = model(inputs, hidden)
    out = jax.block_until_ready(out)
    new_hidden = jax.block_until_ready(new_hidden)

    assert out.shape == (B, N * O)
    assert new_hidden.shape == (L, B, N * U)
    print("KERNEL_OK")
</pallas_src>

<mosaic_0001>
module attributes {stable_mosaic.version = 11 : i64} {
  func.func @decoder_step_kernel(%arg0: i32, %arg1: memref<32x1xf32, #tpu.memory_space<vmem>>, %arg2: memref<32x32xbf16, #tpu.memory_space<vmem>>, %arg3: memref<32x64xf32, #tpu.memory_space<vmem>>, %arg4: memref<99x96xbf16, #tpu.memory_space<vmem>>, %arg5: memref<1x96xf32, #tpu.memory_space<vmem>>, %arg6: memref<192x96xbf16, #tpu.memory_space<vmem>>, %arg7: memref<1x96xf32, #tpu.memory_space<vmem>>, %arg8: memref<32x1xbf16, #tpu.memory_space<vmem>>, %arg9: memref<1x1xf32, #tpu.memory_space<vmem>>, %arg10: memref<32x1xf32, #tpu.memory_space<vmem>>, %arg11: memref<32x64xf32, #tpu.memory_space<vmem>>) attributes {dimension_semantics = [#tpu.dimension_semantics<parallel>], iteration_bounds = array<i64: 1>, scalar_prefetch = 0 : i64, scratch_operands = 0 : i64, tpu.core_type = #tpu.core_type<tc>, window_params = [{transform_indices = @transform_0, window_bounds = array<i64: 32, 1>}, {pipeline_mode = #tpu.pipeline_mode<synchronous>, transform_indices = @transform_1, window_bounds = array<i64: 32, 32>}, {transform_indices = @transform_2, window_bounds = array<i64: 32, 64>}, {pipeline_mode = #tpu.pipeline_mode<synchronous>, transform_indices = @transform_3, window_bounds = array<i64: 99, 96>}, {pipeline_mode = #tpu.pipeline_mode<synchronous>, transform_indices = @transform_4, window_bounds = array<i64: 1, 96>}, {pipeline_mode = #tpu.pipeline_mode<synchronous>, transform_indices = @transform_5, window_bounds = array<i64: 192, 96>}, {pipeline_mode = #tpu.pipeline_mode<synchronous>, transform_indices = @transform_6, window_bounds = array<i64: 1, 96>}, {pipeline_mode = #tpu.pipeline_mode<synchronous>, transform_indices = @transform_7, window_bounds = array<i64: 32, 1>}, {pipeline_mode = #tpu.pipeline_mode<synchronous>, transform_indices = @transform_8, window_bounds = array<i64: 1, 1>}, {transform_indices = @transform_9, window_bounds = array<i64: 32, 1>}, {transform_indices = @transform_10, window_bounds = array<i64: 32, 64>}]} {
    %c0 = arith.constant 0 : index
    %c0_0 = arith.constant 0 : index
    %0 = vector.load %arg2[%c0, %c0_0] : memref<32x32xbf16, #tpu.memory_space<vmem>>, vector<32x32xbf16>
    %c0_1 = arith.constant 0 : index
    %c0_2 = arith.constant 0 : index
    %1 = vector.load %arg1[%c0_1, %c0_2] : memref<32x1xf32, #tpu.memory_space<vmem>>, vector<32x1xf32>
    %c0_3 = arith.constant 0 : index
    %c0_4 = arith.constant 0 : index
    %2 = vector.load %arg3[%c0_3, %c0_4] : memref<32x64xf32, #tpu.memory_space<vmem>>, vector<32x64xf32>
    %c0_5 = arith.constant 0 : index
    %c0_6 = arith.constant 0 : index
    %3 = vector.load %arg4[%c0_5, %c0_6] : memref<99x96xbf16, #tpu.memory_space<vmem>>, vector<99x96xbf16>
    %c0_7 = arith.constant 0 : index
    %c0_8 = arith.constant 0 : index
    %4 = vector.load %arg5[%c0_7, %c0_8] : memref<1x96xf32, #tpu.memory_space<vmem>>, vector<1x96xf32>
    %5 = vector.extract_strided_slice %2 {offsets = [0, 0], sizes = [32, 32], strides = [1, 1]} : vector<32x64xf32> to vector<32x32xf32>
    %6 = arith.truncf %1 : vector<32x1xf32> to vector<32x1xbf16>
    %cst = arith.constant dense<0.000000e+00> : vector<32x1xf32>
    %7 = tpu.matmul %0, %6, %cst {dimension_numbers = #tpu.dot_dimension_numbers<[1], [0], [0], [1], [0, 0, 1, 1], [], []>} : vector<32x32xbf16>, vector<32x1xbf16>, vector<32x1xf32> -> vector<32x1xf32>
    %8 = arith.truncf %7 : vector<32x1xf32> to vector<32x1xbf16>
    %cst_9 = arith.constant dense<0.000000e+00> : vector<32x1xf32>
    %9 = tpu.matmul %0, %8, %cst_9 {dimension_numbers = #tpu.dot_dimension_numbers<[1], [0], [0], [1], [0, 0, 1, 1], [], []>} : vector<32x32xbf16>, vector<32x1xbf16>, vector<32x1xf32> -> vector<32x1xf32>
    %cst_10 = arith.constant 2.000000e+00 : f32
    %10 = vector.broadcast %cst_10 : f32 to vector<32x1xf32>
    %11 = arith.mulf %10, %9 : vector<32x1xf32>
    %12 = arith.subf %11, %1 : vector<32x1xf32>
    %13 = arith.truncf %5 : vector<32x32xf32> to vector<32x32xbf16>
    %cst_11 = arith.constant dense<0.000000e+00> : vector<32x32xf32>
    %14 = tpu.matmul %0, %13, %cst_11 {dimension_numbers = #tpu.dot_dimension_numbers<[1], [0], [0], [1], [0, 0, 1, 1], [], []>} : vector<32x32xbf16>, vector<32x32xbf16>, vector<32x32xf32> -> vector<32x32xf32>
    %15 = arith.truncf %14 : vector<32x32xf32> to vector<32x32xbf16>
    %cst_12 = arith.constant dense<0.000000e+00> : vector<32x32xf32>
    %16 = tpu.matmul %0, %15, %cst_12 {dimension_numbers = #tpu.dot_dimension_numbers<[1], [0], [0], [1], [0, 0, 1, 1], [], []>} : vector<32x32xbf16>, vector<32x32xbf16>, vector<32x32xf32> -> vector<32x32xf32>
    %cst_13 = arith.constant 2.000000e+00 : f32
    %17 = vector.broadcast %cst_13 : f32 to vector<32x32xf32>
    %18 = arith.mulf %17, %16 : vector<32x32xf32>
    %19 = arith.subf %18, %5 : vector<32x32xf32>
    %20 = tpu.concatenate %1, %7, %12, %5, %14, %19 in 1 : vector<32x1xf32>, vector<32x1xf32>, vector<32x1xf32>, vector<32x32xf32>, vector<32x32xf32>, vector<32x32xf32> -> vector<32x99xf32>
    %21 = arith.truncf %20 : vector<32x99xf32> to vector<32x99xbf16>
    %22 = vector.extract_strided_slice %3 {offsets = [0, 0], sizes = [99, 64], strides = [1, 1]} : vector<99x96xbf16> to vector<99x64xbf16>
    %cst_14 = arith.constant dense<0.000000e+00> : vector<32x64xf32>
    %23 = tpu.matmul %21, %22, %cst_14 {dimension_numbers = #tpu.dot_dimension_numbers<[1], [0], [0], [1], [0, 0, 1, 1], [], []>} : vector<32x99xbf16>, vector<99x64xbf16>, vector<32x64xf32> -> vector<32x64xf32>
    %24 = vector.extract_strided_slice %4 {offsets = [0, 0], sizes = [1, 64], strides = [1, 1]} : vector<1x96xf32> to vector<1x64xf32>
    %25 = vector.broadcast %24 : vector<1x64xf32> to vector<32x64xf32>
    %26 = arith.addf %23, %25 : vector<32x64xf32>
    %27 = arith.negf %26 : vector<32x64xf32>
    %28 = math.exp %27 : vector<32x64xf32>
    %cst_15 = arith.constant 1.000000e+00 : f32
    %29 = vector.broadcast %cst_15 : f32 to vector<32x64xf32>
    %30 = arith.addf %29, %28 : vector<32x64xf32>
    %31 = arith.divf %29, %30 : vector<32x64xf32>
    %32 = vector.extract_strided_slice %31 {offsets = [0, 0], sizes = [32, 32], strides = [1, 1]} : vector<32x64xf32> to vector<32x32xf32>
    %33 = vector.extract_strided_slice %31 {offsets = [0, 32], sizes = [32, 32], strides = [1, 1]} : vector<32x64xf32> to vector<32x32xf32>
    %34 = arith.mulf %32, %5 : vector<32x32xf32>
    %35 = arith.truncf %34 : vector<32x32xf32> to vector<32x32xbf16>
    %cst_16 = arith.constant dense<0.000000e+00> : vector<32x32xf32>
    %36 = tpu.matmul %0, %35, %cst_16 {dimension_numbers = #tpu.dot_dimension_numbers<[1], [0], [0], [1], [0, 0, 1, 1], [], []>} : vector<32x32xbf16>, vector<32x32xbf16>, vector<32x32xf32> -> vector<32x32xf32>
    %37 = arith.truncf %36 : vector<32x32xf32> to vector<32x32xbf16>
    %cst_17 = arith.constant dense<0.000000e+00> : vector<32x32xf32>
    %38 = tpu.matmul %0, %37, %cst_17 {dimension_numbers = #tpu.dot_dimension_numbers<[1], [0], [0], [1], [0, 0, 1, 1], [], []>} : vector<32x32xbf16>, vector<32x32xbf16>, vector<32x32xf32> -> vector<32x32xf32>
    %cst_18 = arith.constant 2.000000e+00 : f32
    %39 = vector.broadcast %cst_18 : f32 to vector<32x32xf32>
    %40 = arith.mulf %39, %38 : vector<32x32xf32>
    %41 = arith.subf %40, %34 : vector<32x32xf32>
    %42 = tpu.concatenate %1, %7, %12, %34, %36, %41 in 1 : vector<32x1xf32>, vector<32x1xf32>, vector<32x1xf32>, vector<32x32xf32>, vector<32x32xf32>, vector<32x32xf32> -> vector<32x99xf32>
    %43 = arith.truncf %42 : vector<32x99xf32> to vector<32x99xbf16>
    %44 = vector.extract_strided_slice %3 {offsets = [0, 64], sizes = [99, 32], strides = [1, 1]} : vector<99x96xbf16> to vector<99x32xbf16>
    %cst_19 = arith.constant dense<0.000000e+00> : vector<32x32xf32>
    %45 = tpu.matmul %43, %44, %cst_19 {dimension_numbers = #tpu.dot_dimension_numbers<[1], [0], [0], [1], [0, 0, 1, 1], [], []>} : vector<32x99xbf16>, vector<99x32xbf16>, vector<32x32xf32> -> vector<32x32xf32>
    %46 = vector.extract_strided_slice %4 {offsets = [0, 64], sizes = [1, 32], strides = [1, 1]} : vector<1x96xf32> to vector<1x32xf32>
    %47 = vector.broadcast %46 : vector<1x32xf32> to vector<32x32xf32>
    %48 = arith.addf %45, %47 : vector<32x32xf32>
    %49 = math.tanh %48 : vector<32x32xf32>
    %50 = arith.mulf %33, %5 : vector<32x32xf32>
    %cst_20 = arith.constant 1.000000e+00 : f32
    %51 = vector.broadcast %cst_20 : f32 to vector<32x32xf32>
    %52 = arith.subf %51, %33 : vector<32x32xf32>
    %53 = arith.mulf %52, %49 : vector<32x32xf32>
    %54 = arith.addf %50, %53 : vector<32x32xf32>
    %c0_21 = arith.constant 0 : index
    %c0_22 = arith.constant 0 : index
    %55 = vector.load %arg6[%c0_21, %c0_22] : memref<192x96xbf16, #tpu.memory_space<vmem>>, vector<192x96xbf16>
    %c0_23 = arith.constant 0 : index
    %c0_24 = arith.constant 0 : index
    %56 = vector.load %arg7[%c0_23, %c0_24] : memref<1x96xf32, #tpu.memory_space<vmem>>, vector<1x96xf32>
    %57 = vector.extract_strided_slice %2 {offsets = [0, 32], sizes = [32, 32], strides = [1, 1]} : vector<32x64xf32> to vector<32x32xf32>
    %58 = arith.truncf %54 : vector<32x32xf32> to vector<32x32xbf16>
    %cst_25 = arith.constant dense<0.000000e+00> : vector<32x32xf32>
    %59 = tpu.matmul %0, %58, %cst_25 {dimension_numbers = #tpu.dot_dimension_numbers<[1], [0], [0], [1], [0, 0, 1, 1], [], []>} : vector<32x32xbf16>, vector<32x32xbf16>, vector<32x32xf32> -> vector<32x32xf32>
    %60 = arith.truncf %59 : vector<32x32xf32> to vector<32x32xbf16>
    %cst_26 = arith.constant dense<0.000000e+00> : vector<32x32xf32>
    %61 = tpu.matmul %0, %60, %cst_26 {dimension_numbers = #tpu.dot_dimension_numbers<[1], [0], [0], [1], [0, 0, 1, 1], [], []>} : vector<32x32xbf16>, vector<32x32xbf16>, vector<32x32xf32> -> vector<32x32xf32>
    %cst_27 = arith.constant 2.000000e+00 : f32
    %62 = vector.broadcast %cst_27 : f32 to vector<32x32xf32>
    %63 = arith.mulf %62, %61 : vector<32x32xf32>
    %64 = arith.subf %63, %54 : vector<32x32xf32>
    %65 = arith.truncf %57 : vector<32x32xf32> to vector<32x32xbf16>
    %cst_28 = arith.constant dense<0.000000e+00> : vector<32x32xf32>
    %66 = tpu.matmul %0, %65, %cst_28 {dimension_numbers = #tpu.dot_dimension_numbers<[1], [0], [0], [1], [0, 0, 1, 1], [], []>} : vector<32x32xbf16>, vector<32x32xbf16>, vector<32x32xf32> -> vector<32x32xf32>
    %67 = arith.truncf %66 : vector<32x32xf32> to vector<32x32xbf16>
    %cst_29 = arith.constant dense<0.000000e+00> : vector<32x32xf32>
    %68 = tpu.matmul %0, %67, %cst_29 {dimension_numbers = #tpu.dot_dimension_numbers<[1], [0], [0], [1], [0, 0, 1, 1], [], []>} : vector<32x32xbf16>, vector<32x32xbf16>, vector<32x32xf32> -> vector<32x32xf32>
    %cst_30 = arith.constant 2.000000e+00 : f32
    %69 = vector.broadcast %cst_30 : f32 to vector<32x32xf32>
    %70 = arith.mulf %69, %68 : vector<32x32xf32>
    %71 = arith.subf %70, %57 : vector<32x32xf32>
    %72 = tpu.concatenate %54, %59, %64, %57, %66, %71 in 1 : vector<32x32xf32>, vector<32x32xf32>, vector<32x32xf32>, vector<32x32xf32>, vector<32x32xf32>, vector<32x32xf32> -> vector<32x192xf32>
    %73 = arith.truncf %72 : vector<32x192xf32> to vector<32x192xbf16>
    %74 = vector.extract_strided_slice %55 {offsets = [0, 0], sizes = [192, 64], strides = [1, 1]} : vector<192x96xbf16> to vector<192x64xbf16>
    %cst_31 = arith.constant dense<0.000000e+00> : vector<32x64xf32>
    %75 = tpu.matmul %73, %74, %cst_31 {dimension_numbers = #tpu.dot_dimension_numbers<[1], [0], [0], [1], [0, 0, 1, 1], [], []>} : vector<32x192xbf16>, vector<192x64xbf16>, vector<32x64xf32> -> vector<32x64xf32>
    %76 = vector.extract_strided_slice %56 {offsets = [0, 0], sizes = [1, 64], strides = [1, 1]} : vector<1x96xf32> to vector<1x64xf32>
    %77 = vector.broadcast %76 : vector<1x64xf32> to vector<32x64xf32>
    %78 = arith.addf %75, %77 : vector<32x64xf32>
    %79 = arith.negf %78 : vector<32x64xf32>
    %80 = math.exp %79 : vector<32x64xf32>
    %cst_32 = arith.constant 1.000000e+00 : f32
    %81 = vector.broadcast %cst_32 : f32 to vector<32x64xf32>
    %82 = arith.addf %81, %80 : vector<32x64xf32>
    %83 = arith.divf %81, %82 : vector<32x64xf32>
    %84 = vector.extract_strided_slice %83 {offsets = [0, 0], sizes = [32, 32], strides = [1, 1]} : vector<32x64xf32> to vector<32x32xf32>
    %85 = vector.extract_strided_slice %83 {offsets = [0, 32], sizes = [32, 32], strides = [1, 1]} : vector<32x64xf32> to vector<32x32xf32>
    %86 = arith.mulf %84, %57 : vector<32x32xf32>
    %87 = arith.truncf %86 : vector<32x32xf32> to vector<32x32xbf16>
    %cst_33 = arith.constant dense<0.000000e+00> : vector<32x32xf32>
    %88 = tpu.matmul %0, %87, %cst_33 {dimension_numbers = #tpu.dot_dimension_numbers<[1], [0], [0], [1], [0, 0, 1, 1], [], []>} : vector<32x32xbf16>, vector<32x32xbf16>, vector<32x32xf32> -> vector<32x32xf32>
    %89 = arith.truncf %88 : vector<32x32xf32> to vector<32x32xbf16>
    %cst_34 = arith.constant dense<0.000000e+00> : vector<32x32xf32>
    %90 = tpu.matmul %0, %89, %cst_34 {dimension_numbers = #tpu.dot_dimension_numbers<[1], [0], [0], [1], [0, 0, 1, 1], [], []>} : vector<32x32xbf16>, vector<32x32xbf16>, vector<32x32xf32> -> vector<32x32xf32>
    %cst_35 = arith.constant 2.000000e+00 : f32
    %91 = vector.broadcast %cst_35 : f32 to vector<32x32xf32>
    %92 = arith.mulf %91, %90 : vector<32x32xf32>
    %93 = arith.subf %92, %86 : vector<32x32xf32>
    %94 = tpu.concatenate %54, %59, %64, %86, %88, %93 in 1 : vector<32x32xf32>, vector<32x32xf32>, vector<32x32xf32>, vector<32x32xf32>, vector<32x32xf32>, vector<32x32xf32> -> vector<32x192xf32>
    %95 = arith.truncf %94 : vector<32x192xf32> to vector<32x192xbf16>
    %96 = vector.extract_strided_slice %55 {offsets = [0, 64], sizes = [192, 32], strides = [1, 1]} : vector<192x96xbf16> to vector<192x32xbf16>
    %cst_36 = arith.constant dense<0.000000e+00> : vector<32x32xf32>
    %97 = tpu.matmul %95, %96, %cst_36 {dimension_numbers = #tpu.dot_dimension_numbers<[1], [0], [0], [1], [0, 0, 1, 1], [], []>} : vector<32x192xbf16>, vector<192x32xbf16>, vector<32x32xf32> -> vector<32x32xf32>
    %98 = vector.extract_strided_slice %56 {offsets = [0, 64], sizes = [1, 32], strides = [1, 1]} : vector<1x96xf32> to vector<1x32xf32>
    %99 = vector.broadcast %98 : vector<1x32xf32> to vector<32x32xf32>
    %100 = arith.addf %97, %99 : vector<32x32xf32>
    %101 = math.tanh %100 : vector<32x32xf32>
    %102 = arith.mulf %85, %57 : vector<32x32xf32>
    %cst_37 = arith.constant 1.000000e+00 : f32
    %103 = vector.broadcast %cst_37 : f32 to vector<32x32xf32>
    %104 = arith.subf %103, %85 : vector<32x32xf32>
    %105 = arith.mulf %104, %101 : vector<32x32xf32>
    %106 = arith.addf %102, %105 : vector<32x32xf32>
    %107 = tpu.concatenate %54, %106 in 1 : vector<32x32xf32>, vector<32x32xf32> -> vector<32x64xf32>
    %c0_38 = arith.constant 0 : index
    %c0_39 = arith.constant 0 : index
    %108 = vector.load %arg11[%c0_38, %c0_39] : memref<32x64xf32, #tpu.memory_space<vmem>>, vector<32x64xf32>
    tpu.vector_store %arg11[%c0_38, %c0_39], %107 {strides = array<i32>} : memref<32x64xf32, #tpu.memory_space<vmem>>, vector<32x64xf32>,
    %109 = arith.truncf %106 : vector<32x32xf32> to vector<32x32xbf16>
    %c0_40 = arith.constant 0 : index
    %c0_41 = arith.constant 0 : index
    %110 = vector.load %arg8[%c0_40, %c0_41] : memref<32x1xbf16, #tpu.memory_space<vmem>>, vector<32x1xbf16>
    %cst_42 = arith.constant dense<0.000000e+00> : vector<32x1xf32>
    %111 = tpu.matmul %109, %110, %cst_42 {dimension_numbers = #tpu.dot_dimension_numbers<[1], [0], [0], [1], [0, 0, 1, 1], [], []>} : vector<32x32xbf16>, vector<32x1xbf16>, vector<32x1xf32> -> vector<32x1xf32>
    %c0_43 = arith.constant 0 : index
    %c0_44 = arith.constant 0 : index
    %112 = vector.load %arg9[%c0_43, %c0_44] : memref<1x1xf32, #tpu.memory_space<vmem>>, vector<1x1xf32>
    %113 = vector.broadcast %112 : vector<1x1xf32> to vector<32x1xf32>
    %114 = arith.addf %111, %113 : vector<32x1xf32>
    %c0_45 = arith.constant 0 : index
    %c0_46 = arith.constant 0 : index
    %115 = vector.load %arg10[%c0_45, %c0_46] : memref<32x1xf32, #tpu.memory_space<vmem>>, vector<32x1xf32>
    tpu.vector_store %arg10[%c0_45, %c0_46], %114 {strides = array<i32>} : memref<32x1xf32, #tpu.memory_space<vmem>>, vector<32x1xf32>,
    return
  }
  func.func @transform_0(%arg0: i32) -> (i32, i32) {
    %c0_i32 = arith.constant 0 : i32
    %c0_i32_0 = arith.constant 0 : i32
    return %arg0, %c0_i32 : i32, i32
  }
  func.func @transform_1(%arg0: i32) -> (i32, i32) {
    %c0_i32 = arith.constant 0 : i32
    %c0_i32_0 = arith.constant 0 : i32
    %c0_i32_1 = arith.constant 0 : i32
    return %c0_i32, %c0_i32_0 : i32, i32
  }
  func.func @transform_2(%arg0: i32) -> (i32, i32) {
    %c0_i32 = arith.constant 0 : i32
    %c0_i32_0 = arith.constant 0 : i32
    return %arg0, %c0_i32 : i32, i32
  }
  func.func @transform_3(%arg0: i32) -> (i32, i32) {
    %c0_i32 = arith.constant 0 : i32
    %c0_i32_0 = arith.constant 0 : i32
    %c0_i32_1 = arith.constant 0 : i32
    return %c0_i32, %c0_i32_0 : i32, i32
  }
  func.func @transform_4(%arg0: i32) -> (i32, i32) {
    %c0_i32 = arith.constant 0 : i32
    %c0_i32_0 = arith.constant 0 : i32
    %c0_i32_1 = arith.constant 0 : i32
    return %c0_i32, %c0_i32_0 : i32, i32
  }
  func.func @transform_5(%arg0: i32) -> (i32, i32) {
    %c0_i32 = arith.constant 0 : i32
    %c0_i32_0 = arith.constant 0 : i32
    %c0_i32_1 = arith.constant 0 : i32
    return %c0_i32, %c0_i32_0 : i32, i32
  }
  func.func @transform_6(%arg0: i32) -> (i32, i32) {
    %c0_i32 = arith.constant 0 : i32
    %c0_i32_0 = arith.constant 0 : i32
    %c0_i32_1 = arith.constant 0 : i32
    return %c0_i32, %c0_i32_0 : i32, i32
  }
  func.func @transform_7(%arg0: i32) -> (i32, i32) {
    %c0_i32 = arith.constant 0 : i32
    %c0_i32_0 = arith.constant 0 : i32
    %c0_i32_1 = arith.constant 0 : i32
    return %c0_i32, %c0_i32_0 : i32, i32
  }
  func.func @transform_8(%arg0: i32) -> (i32, i32) {
    %c0_i32 = arith.constant 0 : i32
    %c0_i32_0 = arith.constant 0 : i32
    %c0_i32_1 = arith.constant 0 : i32
    return %c0_i32, %c0_i32_0 : i32, i32
  }
  func.func @transform_9(%arg0: i32) -> (i32, i32) {
    %c0_i32 = arith.constant 0 : i32
    %c0_i32_0 = arith.constant 0 : i32
    return %arg0, %c0_i32 : i32, i32
  }
  func.func @transform_10(%arg0: i32) -> (i32, i32) {
    %c0_i32 = arith.constant 0 : i32
    %c0_i32_0 = arith.constant 0 : i32
    return %arg0, %c0_i32 : i32, i32
  }
}

</mosaic_0001>

<llo_original>
// kernel: _forward_impl.1
$region0: #{_forward_impl.1}
  #allocation0 [shape = 'u32[]', space=smem, size = 0x4, offset = 0x4, fixed_abs, tag = 'smem constant byte address 0x4 - core index']
  #allocation1 [shape = 'u32[144,128]{1,0:T(1,128)}', space=vmem, size = 0x12000, scoped, tag = 'internal scratch']
  #allocation2 [shape = 'f32[1,1]{1,0:T(1,128)S(1)}', space=vmem, size = 0x200, scoped, tag = 'scoped memory for _forward_impl.1']
  %s0 = inlined_call_operand.vmem [shape: f32[32,1], index: 0, kind: input, shape index: {}]
  %s1 = inlined_call_operand.vmem [shape: bf16[32,32], index: 1, kind: input, shape index: {}]
  %s2 = inlined_call_operand.vmem [shape: f32[32,64], index: 2, kind: input, shape index: {}, may-alias: {2,10}]
  %s3 = inlined_call_operand.vmem [shape: bf16[99,96], index: 3, kind: input, shape index: {}]
  %s4 = inlined_call_operand.vmem [shape: f32[1,96], index: 4, kind: input, shape index: {}, may-alias: {4,6}]
  %s5 = inlined_call_operand.vmem [shape: bf16[192,96], index: 5, kind: input, shape index: {}]
  %s6 = inlined_call_operand.vmem [shape: f32[1,96], index: 6, kind: input, shape index: {}, may-alias: {4,6}]
  %s7 = inlined_call_operand.vmem [shape: bf16[32,1], index: 7, kind: input, shape index: {}]
  %s8 = inlined_call_operand.<no memory space> [shape: f32[1,1], index: 8, kind: input, shape index: {}]
  %s9 = inlined_call_operand.vmem [shape: f32[32,1], index: 9, kind: output, shape index: {0}]
  %s10 = inlined_call_operand.vmem [shape: f32[32,64], index: 10, kind: output, shape index: {1}, may-alias: {2,10}]
  %11 = xla_tuple %s9, %s10
  %s12 = sld [smem:[#allocation0]]
  $region54: #{_forward_impl.1} parent=0
    _
  %s14 = ssub.s32 1, %s12
  %s15 = scalar_select 0, %s14, %s12
  %v16 = vstv %s8
  %17 = vst [vmem:[#allocation2] sm:$0x1] %v16
  // Predicated region
  $region2: #{_forward_impl.1} parent=0 // pred_check
    _
  $region3: #{_forward_impl.1} parent=0 // pred_check_branch
    %19 = sbr.rel (0) target = $region5
  $region4: #{_forward_impl.1} parent=0 // pred_region
    _
  $region5: #{_forward_impl.1} parent=0 // pred_fallthru
    _
  // Predicated region
  $region6: #{_forward_impl.1} parent=0 // pred_check
    _
  $region7: #{_forward_impl.1} parent=0 // pred_check_branch
    %21 = sbr.rel (0) target = $region9
  $region8: #{_forward_impl.1} parent=0 // pred_region
    _
  $region9: #{_forward_impl.1} parent=0 // pred_fallthru
    _
  // Predicated region
  $region10: #{_forward_impl.1} parent=0 // pred_check
    _
  $region11: #{_forward_impl.1} parent=0 // pred_check_branch
    %23 = sbr.rel (0) target = $region13
  $region12: #{_forward_impl.1} parent=0 // pred_region
    _
  $region13: #{_forward_impl.1} parent=0 // pred_fallthru
    _
  // Predicated region
  $region14: #{_forward_impl.1} parent=0 // pred_check
    _
  $region15: #{_forward_impl.1} parent=0 // pred_check_branch
    %25 = sbr.rel (0) target = $region17
  $region16: #{_forward_impl.1} parent=0 // pred_region
    _
  $region17: #{_forward_impl.1} parent=0 // pred_fallthru
    _
  // Predicated region
  $region18: #{_forward_impl.1} parent=0 // pred_check
    _
  $region19: #{_forward_impl.1} parent=0 // pred_check_branch
    %27 = sbr.rel (0) target = $region21
  $region20: #{_forward_impl.1} parent=0 // pred_region
    _
  $region21: #{_forward_impl.1} parent=0 // pred_fallthru
    _
  // Predicated region
  $region22: #{_forward_impl.1} parent=0 // pred_check
    _
  $region23: #{_forward_impl.1} parent=0 // pred_check_branch
    %29 = sbr.rel (0) target = $region25
  $region24: #{_forward_impl.1} parent=0 // pred_region
    _
  $region25: #{_forward_impl.1} parent=0 // pred_fallthru
    _
  // Predicated region
  $region26: #{_forward_impl.1} parent=0 // pred_check
    _
  $region27: #{_forward_impl.1} parent=0 // pred_check_branch
    %31 = sbr.rel (0) target = $region29
  $region28: #{_forward_impl.1} parent=0 // pred_region
    _
  $region29: #{_forward_impl.1} parent=0 // pred_fallthru
    _
  // Predicated region
  $region30: #{_forward_impl.1} parent=0 // pred_check
    _
  $region31: #{_forward_impl.1} parent=0 // pred_check_branch
    %33 = sbr.rel (0) target = $region33
  $region32: #{_forward_impl.1} parent=0 // pred_region
    _
  $region33: #{_forward_impl.1} parent=0 // pred_fallthru
    _
  // Predicated region
  $region34: #{_forward_impl.1} parent=0 // pred_check
    _
  $region35: #{_forward_impl.1} parent=0 // pred_check_branch
    %35 = sbr.rel (0) target = $region37
  $region36: #{_forward_impl.1} parent=0 // pred_region
    _
  $region37: #{_forward_impl.1} parent=0 // pred_fallthru
    _
  %v37 = vld [vmem:[%s1] sm:$0xf]
  %v38 = vld [vmem:[%s1 + $0x4] sm:$0xf]
  %v39 = vld [vmem:[%s1 + $0x8] sm:$0xf]
  %v40 = vld [vmem:[%s1 + $0xc] sm:$0xf]
  %v41 = vld [vmem:[%s0] sm:$0xff]
  %v42 = vld [vmem:[%s0 + $0x8] sm:$0xff]
  %v43 = vld [vmem:[%s0 + $0x10] sm:$0xff]
  %v44 = vld [vmem:[%s0 + $0x18] sm:$0xff]
  %v45 = vld [vmem:[%s2] sm:$0xff]
  %v46 = vld [vmem:[%s2 + $0x8] sm:$0xff]
  %v47 = vld [vmem:[%s2 + $0x10] sm:$0xff]
  %v48 = vld [vmem:[%s2 + $0x18] sm:$0xff]
  %v49 = vld [vmem:[%s3] sm:$0xf]
  %v50 = vld [vmem:[%s3 + $0x4] sm:$0xf]
  %v51 = vld [vmem:[%s3 + $0x8] sm:$0xf]
  %v52 = vld [vmem:[%s3 + $0xc] sm:$0xf]
  %v53 = vld [vmem:[%s3 + $0x10] sm:$0xf]
  %v54 = vld [vmem:[%s3 + $0x14] sm:$0xf]
  %v55 = vld [vmem:[%s3 + $0x18] sm:$0xf]
  %v56 = vld [vmem:[%s3 + $0x1c] sm:$0xf]
  %v57 = vld [vmem:[%s3 + $0x20] sm:$0xf]
  %v58 = vld [vmem:[%s3 + $0x24] sm:$0xf]
  %v59 = vld [vmem:[%s3 + $0x28] sm:$0xf]
  %v60 = vld [vmem:[%s3 + $0x2c] sm:$0xf]
  %v61 = vld [vmem:[%s3 + $0x30] sm:$0x3]
  %v62 = vld [vmem:[%s4] sm:$0x1]
  %v63 = vpack.c.bf16 %v42, %v41
  %v64 = vpack.c.bf16 %v44, %v43
  %v69 = vunpack.c.l.b16 %v37
  %v70 = vunpack.c.l.b16 %v38
  %v71 = vunpack.c.l.b16 %v39
  %v72 = vunpack.c.l.b16 %v40
  %v73 = vpack.c.b16 %v70, %v69
  %v74 = vpack.c.b16 %v72, %v71
  %vm75 = vcmask 261120
  %v77 = vsel %vm75, %v73, 0
  %v80 = vsel %vm75, %v74, 0
  %82 = vmatprep.subr.bf16.mxu0 0
  %83 = vmatpush1.bf16.msra.mxu0 %v63
  %84 = vmatprep.subr.bf16.mxu0 0
  %85 = vmatpush1.bf16.msra.mxu0 %v64
  %86 = vmatprep.subr.bf16.mxu0 0
  %87 = vmatpush1.bf16.msra.mxu0 0
  %88 = vmatprep.subr.bf16.mxu0 0
  %89 = vmatpush1.bf16.msra.mxu0 0
  %90 = vmatprep.subr.bf16.mxu0 0
  %91 = vmatpush1.bf16.msra.mxu0 0
  %92 = vmatprep.subr.bf16.mxu0 0
  %93 = vmatpush1.bf16.msra.mxu0 0
  %94 = vmatprep.subr.bf16.mxu0 0
  %95 = vmatpush1.bf16.msra.mxu0 0
  %96 = vmatprep.subr.bf16.mxu0 0
  %97 = vmatpush1.bf16.msra.mxu0 0
  %98 = vmatprep.subr.bf16.mxu0 0
  %99 = vmatpush1.bf16.msra.mxu0 0
  %100 = vmatprep.subr.bf16.mxu0 0
  %101 = vmatpush1.bf16.msra.mxu0 0
  %102 = vmatprep.subr.bf16.mxu0 0
  %103 = vmatpush1.bf16.msra.mxu0 0
  %104 = vmatprep.subr.bf16.mxu0 0
  %105 = vmatpush1.bf16.msra.mxu0 0
  %106 = vmatprep.subr.bf16.mxu0 0
  %107 = vmatpush1.bf16.msra.mxu0 0
  %108 = vmatprep.subr.bf16.mxu0 0
  %109 = vmatpush1.bf16.msra.mxu0 0
  %110 = vmatprep.subr.bf16.mxu0 0
  %111 = vmatpush1.bf16.msra.mxu0 0
  %112 = vmatprep.subr.bf16.mxu0 0
  %113 = vmatpush1.bf16.msra.mxu0 0
  %114 = vmatprep.mubr.bf16.mxu0 0
  %115 = vmatmul.mubr.bf16.gmra.mrb[0].mxu0 %v77
  %v116 = vpop.f32.mrb[0].mxu0
  %v117 = vadd.f32 0.0, %v116
  %v118 = vpop.f32.mrb[0].mxu0
  %v119 = vpop.f32.mrb[0].mxu0
  %v120 = vadd.f32 0.0, %v119
  %v121 = vpop.f32.mrb[0].mxu0
  %122 = vmatprep.mubr.bf16.mxu0 0
  %123 = vmatmul.mubr.bf16.gmra.mrb[0].mxu0 %v80
  %v124 = vpop.f32.mrb[0].mxu0
  %v125 = vadd.f32 0.0, %v124
  %v126 = vpop.f32.mrb[0].mxu0
  %v127 = vpop.f32.mrb[0].mxu0
  %v128 = vadd.f32 0.0, %v127
  %v129 = vpop.f32.mrb[0].mxu0
  %130 = vdwg.mxu0
  %v131 = vpack.c.bf16 %v120, %v117
  %v132 = vpack.c.bf16 %v128, %v125
  %133 = vmatprep.subr.bf16.mxu0 0
  %134 = vmatpush1.bf16.msra.mxu0 %v131
  %135 = vmatprep.subr.bf16.mxu0 0
  %136 = vmatpush1.bf16.msra.mxu0 %v132
  %137 = vmatprep.subr.bf16.mxu0 0
  %138 = vmatpush1.bf16.msra.mxu0 0
  %139 = vmatprep.subr.bf16.mxu0 0
  %140 = vmatpush1.bf16.msra.mxu0 0
  %141 = vmatprep.subr.bf16.mxu0 0
  %142 = vmatpush1.bf16.msra.mxu0 0
  %143 = vmatprep.subr.bf16.mxu0 0
  %144 = vmatpush1.bf16.msra.mxu0 0
  %145 = vmatprep.subr.bf16.mxu0 0
  %146 = vmatpush1.bf16.msra.mxu0 0
  %147 = vmatprep.subr.bf16.mxu0 0
  %148 = vmatpush1.bf16.msra.mxu0 0
  %149 = vmatprep.subr.bf16.mxu0 0
  %150 = vmatpush1.bf16.msra.mxu0 0
  %151 = vmatprep.subr.bf16.mxu0 0
  %152 = vmatpush1.bf16.msra.mxu0 0
  %153 = vmatprep.subr.bf16.mxu0 0
  %154 = vmatpush1.bf16.msra.mxu0 0
  %155 = vmatprep.subr.bf16.mxu0 0
  %156 = vmatpush1.bf16.msra.mxu0 0
  %157 = vmatprep.subr.bf16.mxu0 0
  %158 = vmatpush1.bf16.msra.mxu0 0
  %159 = vmatprep.subr.bf16.mxu0 0
  %160 = vmatpush1.bf16.msra.mxu0 0
  %161 = vmatprep.subr.bf16.mxu0 0
  %162 = vmatpush1.bf16.msra.mxu0 0
  %163 = vmatprep.subr.bf16.mxu0 0
  %164 = vmatpush1.bf16.msra.mxu0 0
  %165 = vmatprep.mubr.bf16.mxu0 0
  %166 = vmatmul.mubr.bf16.gmra.mrb[0].mxu0 %v77
  %v167 = vpop.f32.mrb[0].mxu0
  %v168 = vadd.f32 0.0, %v167
  %v169 = vpop.f32.mrb[0].mxu0
  %v170 = vpop.f32.mrb[0].mxu0
  %v171 = vadd.f32 0.0, %v170
  %v172 = vpop.f32.mrb[0].mxu0
  %173 = vmatprep.mubr.bf16.mxu0 0
  %174 = vmatmul.mubr.bf16.gmra.mrb[0].mxu0 %v80
  %v175 = vpop.f32.mrb[0].mxu0
  %v176 = vadd.f32 0.0, %v175
  %v177 = vpop.f32.mrb[0].mxu0
  %v178 = vpop.f32.mrb[0].mxu0
  %v179 = vadd.f32 0.0, %v178
  %v180 = vpop.f32.mrb[0].mxu0
  %181 = vdwg.mxu0
  %v182 = vmul.f32 %v168, 2.0
  %v183 = vmul.f32 %v171, 2.0
  %v184 = vmul.f32 %v176, 2.0
  %v185 = vmul.f32 %v179, 2.0
  %v186 = vsub.f32 %v182, %v41
  %v187 = vsub.f32 %v183, %v42
  %v188 = vsub.f32 %v184, %v43
  %v189 = vsub.f32 %v185, %v44
  %v190 = vpack.c.bf16 %v46, %v45
  %v191 = vpack.c.bf16 %v48, %v47
  %192 = vmatprep.subr.bf16.mxu0 0
  %193 = vmatpush1.bf16.msra.mxu0 %v190
  %194 = vmatprep.subr.bf16.mxu0 0
  %195 = vmatpush1.bf16.msra.mxu0 %v191
  %196 = vmatprep.subr.bf16.mxu0 0
  %197 = vmatpush1.bf16.msra.mxu0 0
  %198 = vmatprep.subr.bf16.mxu0 0
  %199 = vmatpush1.bf16.msra.mxu0 0
  %200 = vmatprep.subr.bf16.mxu0 0
  %201 = vmatpush1.bf16.msra.mxu0 0
  %202 = vmatprep.subr.bf16.mxu0 0
  %203 = vmatpush1.bf16.msra.mxu0 0
  %204 = vmatprep.subr.bf16.mxu0 0
  %205 = vmatpush1.bf16.msra.mxu0 0
  %206 = vmatprep.subr.bf16.mxu0 0
  %207 = vmatpush1.bf16.msra.mxu0 0
  %208 = vmatprep.subr.bf16.mxu0 0
  %209 = vmatpush1.bf16.msra.mxu0 0
  %210 = vmatprep.subr.bf16.mxu0 0
  %211 = vmatpush1.bf16.msra.mxu0 0
  %212 = vmatprep.subr.bf16.mxu0 0
  %213 = vmatpush1.bf16.msra.mxu0 0
  %214 = vmatprep.subr.bf16.mxu0 0
  %215 = vmatpush1.bf16.msra.mxu0 0
  %216 = vmatprep.subr.bf16.mxu0 0
  %217 = vmatpush1.bf16.msra.mxu0 0
  %218 = vmatprep.subr.bf16.mxu0 0
  %219 = vmatpush1.bf16.msra.mxu0 0
  %220 = vmatprep.subr.bf16.mxu0 0
  %221 = vmatpush1.bf16.msra.mxu0 0
  %222 = vmatprep.subr.bf16.mxu0 0
  %223 = vmatpush1.bf16.msra.mxu0 0
  %224 = vmatprep.mubr.bf16.mxu0 0
  %225 = vmatmul.mubr.bf16.gmra.mrb[0].mxu0 %v77
  %v226 = vpop.f32.mrb[0].mxu0
  %v227 = vadd.f32 0.0, %v226
  %v228 = vpop.f32.mrb[0].mxu0
  %v229 = vpop.f32.mrb[0].mxu0
  %v230 = vadd.f32 0.0, %v229
  %v231 = vpop.f32.mrb[0].mxu0
  %232 = vmatprep.mubr.bf16.mxu0 0
  %233 = vmatmul.mubr.bf16.gmra.mrb[0].mxu0 %v80
  %v234 = vpop.f32.mrb[0].mxu0
  %v235 = vadd.f32 0.0, %v234
  %v236 = vpop.f32.mrb[0].mxu0
  %v237 = vpop.f32.mrb[0].mxu0
  %v238 = vadd.f32 0.0, %v237
  %v239 = vpop.f32.mrb[0].mxu0
  %240 = vdwg.mxu0
  %v241 = vpack.c.bf16 %v230, %v227
  %v242 = vpack.c.bf16 %v238, %v235
  %243 = vmatprep.subr.bf16.mxu0 0
  %244 = vmatpush1.bf16.msra.mxu0 %v241
  %245 = vmatprep.subr.bf16.mxu0 0
  %246 = vmatpush1.bf16.msra.mxu0 %v242
  %247 = vmatprep.subr.bf16.mxu0 0
  %248 = vmatpush1.bf16.msra.mxu0 0
  %249 = vmatprep.subr.bf16.mxu0 0
  %250 = vmatpush1.bf16.msra.mxu0 0
  %251 = vmatprep.subr.bf16.mxu0 0
  %252 = vmatpush1.bf16.msra.mxu0 0
  %253 = vmatprep.subr.bf16.mxu0 0
  %254 = vmatpush1.bf16.msra.mxu0 0
  %255 = vmatprep.subr.bf16.mxu0 0
  %256 = vmatpush1.bf16.msra.mxu0 0
  %257 = vmatprep.subr.bf16.mxu0 0
  %258 = vmatpush1.bf16.msra.mxu0 0
  %259 = vmatprep.subr.bf16.mxu0 0
  %260 = vmatpush1.bf16.msra.mxu0 0
  %261 = vmatprep.subr.bf16.mxu0 0
  %262 = vmatpush1.bf16.msra.mxu0 0
  %263 = vmatprep.subr.bf16.mxu0 0
  %264 = vmatpush1.bf16.msra.mxu0 0
  %265 = vmatprep.subr.bf16.mxu0 0
  %266 = vmatpush1.bf16.msra.mxu0 0
  %267 = vmatprep.subr.bf16.mxu0 0
  %268 = vmatpush1.bf16.msra.mxu0 0
  %269 = vmatprep.subr.bf16.mxu0 0
  %270 = vmatpush1.bf16.msra.mxu0 0
  %271 = vmatprep.subr.bf16.mxu0 0
  %272 = vmatpush1.bf16.msra.mxu0 0
  %273 = vmatprep.subr.bf16.mxu0 0
  %274 = vmatpush1.bf16.msra.mxu0 0
  %275 = vmatprep.mubr.bf16.mxu0 0
  %276 = vmatmul.mubr.bf16.gmra.mrb[0].mxu0 %v77
  %v277 = vpop.f32.mrb[0].mxu0
  %v278 = vadd.f32 0.0, %v277
  %v279 = vpop.f32.mrb[0].mxu0
  %v280 = vpop.f32.mrb[0].mxu0
  %v281 = vadd.f32 0.0, %v280
  %v282 = vpop.f32.mrb[0].mxu0
  %283 = vmatprep.mubr.bf16.mxu0 0
  %284 = vmatmul.mubr.bf16.gmra.mrb[0].mxu0 %v80
  %v285 = vpop.f32.mrb[0].mxu0
  %v286 = vadd.f32 0.0, %v285
  %v287 = vpop.f32.mrb[0].mxu0
  %v288 = vpop.f32.mrb[0].mxu0
  %v289 = vadd.f32 0.0, %v288
  %v290 = vpop.f32.mrb[0].mxu0
  %291 = vdwg.mxu0
  %v292 = vmul.f32 %v278, 2.0
  %v293 = vmul.f32 %v281, 2.0
  %v294 = vmul.f32 %v286, 2.0
  %v295 = vmul.f32 %v289, 2.0
  %v296 = vsub.f32 %v292, %v45
  %v297 = vsub.f32 %v293, %v46
  %v298 = vsub.f32 %v294, %v47
  %v299 = vsub.f32 %v295, %v48
  %304 = vrot.lane.b32.xlu0 %v117, 1
  %v305 = vpop.permute.xlu0 %304
  %306 = vrot.lane.b32.xlu0 %v120, 1
  %v307 = vpop.permute.xlu0 %306
  %308 = vrot.lane.b32.xlu0 %v125, 1
  %v309 = vpop.permute.xlu0 %308
  %310 = vrot.lane.b32.xlu0 %v128, 1
  %v311 = vpop.permute.xlu0 %310
  %320 = vrot.lane.b32.xlu0 %v186, 2
  %v321 = vpop.permute.xlu0 %320
  %322 = vrot.lane.b32.xlu0 %v187, 2
  %v323 = vpop.permute.xlu0 %322
  %324 = vrot.lane.b32.xlu0 %v188, 2
  %v325 = vpop.permute.xlu0 %324
  %326 = vrot.lane.b32.xlu0 %v189, 2
  %v327 = vpop.permute.xlu0 %326
  %336 = vrot.lane.b32.xlu0 %v45, 3
  %v337 = vpop.permute.xlu0 %336
  %338 = vrot.lane.b32.xlu0 %v46, 3
  %v339 = vpop.permute.xlu0 %338
  %340 = vrot.lane.b32.xlu0 %v47, 3
  %v341 = vpop.permute.xlu0 %340
  %342 = vrot.lane.b32.xlu0 %v48, 3
  %v343 = vpop.permute.xlu0 %342
  %352 = vrot.lane.b32.xlu0 %v227, 35
  %v353 = vpop.permute.xlu0 %352
  %354 = vrot.lane.b32.xlu0 %v230, 35
  %v355 = vpop.permute.xlu0 %354
  %356 = vrot.lane.b32.xlu0 %v235, 35
  %v357 = vpop.permute.xlu0 %356
  %358 = vrot.lane.b32.xlu0 %v238, 35
  %v359 = vpop.permute.xlu0 %358
  %368 = vrot.lane.b32.xlu0 %v296, 67
  %v369 = vpop.permute.xlu0 %368
  %370 = vrot.lane.b32.xlu0 %v297, 67
  %v371 = vpop.permute.xlu0 %370
  %372 = vrot.lane.b32.xlu0 %v298, 67
  %v373 = vpop.permute.xlu0 %372
  %374 = vrot.lane.b32.xlu0 %v299, 67
  %v375 = vpop.permute.xlu0 %374
  %vm380 = vcmask 7168
  %v381 = vsel %vm380, %v41, %v305
  %v382 = vsel %vm380, %v42, %v307
  %v383 = vsel %vm380, %v43, %v309
  %v384 = vsel %vm380, %v44, %v311
  %vm385 = vcmask 15360
  %v386 = vsel %vm385, %v381, %v321
  %v387 = vsel %vm385, %v382, %v323
  %v388 = vsel %vm385, %v383, %v325
  %v389 = vsel %vm385, %v384, %v327
  %vm390 = vcmask 23552
  %v391 = vsel %vm390, %v386, %v337
  %v392 = vsel %vm390, %v387, %v339
  %v393 = vsel %vm390, %v388, %v341
  %v394 = vsel %vm390, %v389, %v343
  %vm395 = vcmask 285696
  %v396 = vsel %vm395, %v391, %v353
  %v397 = vsel %vm395, %v392, %v355
  %v398 = vsel %vm395, %v393, %v357
  %v399 = vsel %vm395, %v394, %v359
  %vm400 = vcmask 547840
  %v401 = vsel %vm400, %v396, %v369
  %v402 = vsel %vm400, %v397, %v371
  %v403 = vsel %vm400, %v398, %v373
  %v404 = vsel %vm400, %v399, %v375
  %v405 = vpack.c.bf16 %v402, %v401
  %v406 = vpack.c.bf16 %v404, %v403
  %v408 = vlaneseq
  %v409 = vshrl.u32 %v408, 7
  %v410 = vsub.s32 0, %v409
  %v411 = vrot.slane %v62, %v410
  %v426 = vunpack.c.l.b16 %v49
  %v427 = vunpack.c.l.b16 %v50
  %v428 = vunpack.c.l.b16 %v51
  %v429 = vunpack.c.l.b16 %v52
  %v430 = vunpack.c.l.b16 %v53
  %v431 = vunpack.c.l.b16 %v54
  %v432 = vunpack.c.l.b16 %v55
  %v433 = vunpack.c.l.b16 %v56
  %v434 = vunpack.c.l.b16 %v57
  %v435 = vunpack.c.l.b16 %v58
  %v436 = vunpack.c.l.b16 %v59
  %v437 = vunpack.c.l.b16 %v60
  %v438 = vunpack.c.l.b16 %v61
  %v439 = vpack.c.b16 %v427, %v426
  %v440 = vpack.c.b16 %v429, %v428
  %v441 = vpack.c.b16 %v431, %v430
  %v442 = vpack.c.b16 %v433, %v432
  %v443 = vpack.c.b16 %v435, %v434
  %v444 = vpack.c.b16 %v437, %v436
  %v445 = vpack.c.b16 %v438, %v438
  %vm452 = vcmask 809984
  %v454 = vsel %vm452, %v405, 0
  %v457 = vsel %vm452, %v406, 0
  %vm459 = vcmask 1040384
  %vm460 = vcmask 1041408
  %v461 = vsel %vm459, 4294967295, 65535
  %v462 = vsel %vm460, %v461, 0
  %v464 = vand.u32 %v445, %v462
  %466 = vmatprep.subr.bf16.mxu0 0
  %467 = vmatpush1.bf16.msra.mxu0 %v439
  %468 = vmatprep.subr.bf16.mxu0 0
  %469 = vmatpush1.bf16.msra.mxu0 %v440
  %470 = vmatprep.subr.bf16.mxu0 0
  %471 = vmatpush1.bf16.msra.mxu0 %v441
  %472 = vmatprep.subr.bf16.mxu0 0
  %473 = vmatpush1.bf16.msra.mxu0 %v442
  %474 = vmatprep.subr.bf16.mxu0 0
  %475 = vmatpush1.bf16.msra.mxu0 %v443
  %476 = vmatprep.subr.bf16.mxu0 0
  %477 = vmatpush1.bf16.msra.mxu0 %v444
  %478 = vmatprep.subr.bf16.mxu0 0
  %479 = vmatpush1.bf16.msra.mxu0 %v464
  %480 = vmatprep.subr.bf16.mxu0 0
  %481 = vmatpush1.bf16.msra.mxu0 0
  %482 = vmatprep.subr.bf16.mxu0 0
  %483 = vmatpush1.bf16.msra.mxu0 0
  %484 = vmatprep.subr.bf16.mxu0 0
  %485 = vmatpush1.bf16.msra.mxu0 0
  %486 = vmatprep.subr.bf16.mxu0 0
  %487 = vmatpush1.bf16.msra.mxu0 0
  %488 = vmatprep.subr.bf16.mxu0 0
  %489 = vmatpush1.bf16.msra.mxu0 0
  %490 = vmatprep.subr.bf16.mxu0 0
  %491 = vmatpush1.bf16.msra.mxu0 0
  %492 = vmatprep.subr.bf16.mxu0 0
  %493 = vmatpush1.bf16.msra.mxu0 0
  %494 = vmatprep.subr.bf16.mxu0 0
  %495 = vmatpush1.bf16.msra.mxu0 0
  %496 = vmatprep.subr.bf16.mxu0 0
  %497 = vmatpush1.bf16.msra.mxu0 0
  %498 = vmatprep.mubr.bf16.mxu0 0
  %499 = vmatmul.mubr.bf16.gmra.mrb[0].mxu0 %v454
  %v500 = vpop.f32.mrb[0].mxu0
  %v501 = vadd.f32 %v411, %v500
  %v502 = vpop.f32.mrb[0].mxu0
  %v503 = vpop.f32.mrb[0].mxu0
  %v504 = vadd.f32 %v411, %v503
  %v505 = vpop.f32.mrb[0].mxu0
  %506 = vmatprep.mubr.bf16.mxu0 0
  %507 = vmatmul.mubr.bf16.gmra.mrb[0].mxu0 %v457
  %v508 = vpop.f32.mrb[0].mxu0
  %v509 = vadd.f32 %v411, %v508
  %v510 = vpop.f32.mrb[0].mxu0
  %v511 = vpop.f32.mrb[0].mxu0
  %v512 = vadd.f32 %v411, %v511
  %v513 = vpop.f32.mrb[0].mxu0
  %514 = vdwg.mxu0
  %v515 = vxor.u32 %v501, 2147483648
  %v516 = vxor.u32 %v504, 2147483648
  %v517 = vxor.u32 %v509, 2147483648
  %v518 = vxor.u32 %v512, 2147483648
  %v519 = vmul.f32 %v515, 1.442695
  %v520 = vpow.pop %v519
  %v521 = vmul.f32 %v516, 1.442695
  %v522 = vpow.pop %v521
  %v523 = vmul.f32 %v517, 1.442695
  %v524 = vpow.pop %v523
  %v525 = vmul.f32 %v518, 1.442695
  %v526 = vpow.pop %v525
  %v527 = vadd.f32 %v520, 1.0
  %v528 = vadd.f32 %v522, 1.0
  %v529 = vadd.f32 %v524, 1.0
  %v530 = vadd.f32 %v526, 1.0
  %v531 = vrcp.pop %v527
  %v532 = vmul.f32 1.0, %v531
  %v533 = vrcp.pop %v528
  %v534 = vmul.f32 1.0, %v533
  %v535 = vrcp.pop %v529
  %v536 = vmul.f32 1.0, %v535
  %v537 = vrcp.pop %v530
  %v538 = vmul.f32 1.0, %v537
  %v539 = vmul.f32 %v532, %v45
  %v540 = vmul.f32 %v534, %v46
  %v541 = vmul.f32 %v536, %v47
  %v542 = vmul.f32 %v538, %v48
  %v543 = vpack.c.bf16 %v540, %v539
  %v544 = vpack.c.bf16 %v542, %v541
  %545 = vmatprep.subr.bf16.mxu0 0
  %546 = vmatpush1.bf16.msra.mxu0 %v543
  %547 = vmatprep.subr.bf16.mxu0 0
  %548 = vmatpush1.bf16.msra.mxu0 %v544
  %549 = vmatprep.subr.bf16.mxu0 0
  %550 = vmatpush1.bf16.msra.mxu0 0
  %551 = vmatprep.subr.bf16.mxu0 0
  %552 = vmatpush1.bf16.msra.mxu0 0
  %553 = vmatprep.subr.bf16.mxu0 0
  %554 = vmatpush1.bf16.msra.mxu0 0
  %555 = vmatprep.subr.bf16.mxu0 0
  %556 = vmatpush1.bf16.msra.mxu0 0
  %557 = vmatprep.subr.bf16.mxu0 0
  %558 = vmatpush1.bf16.msra.mxu0 0
  %559 = vmatprep.subr.bf16.mxu0 0
  %560 = vmatpush1.bf16.msra.mxu0 0
  %561 = vmatprep.subr.bf16.mxu0 0
  %562 = vmatpush1.bf16.msra.mxu0 0
  %563 = vmatprep.subr.bf16.mxu0 0
  %564 = vmatpush1.bf16.msra.mxu0 0
  %565 = vmatprep.subr.bf16.mxu0 0
  %566 = vmatpush1.bf16.msra.mxu0 0
  %567 = vmatprep.subr.bf16.mxu0 0
  %568 = vmatpush1.bf16.msra.mxu0 0
  %569 = vmatprep.subr.bf16.mxu0 0
  %570 = vmatpush1.bf16.msra.mxu0 0
  %571 = vmatprep.subr.bf16.mxu0 0
  %572 = vmatpush1.bf16.msra.mxu0 0
  %573 = vmatprep.subr.bf16.mxu0 0
  %574 = vmatpush1.bf16.msra.mxu0 0
  %575 = vmatprep.subr.bf16.mxu0 0
  %576 = vmatpush1.bf16.msra.mxu0 0
  %577 = vmatprep.mubr.bf16.mxu0 0
  %578 = vmatmul.mubr.bf16.gmra.mrb[0].mxu0 %v77
  %v579 = vpop.f32.mrb[0].mxu0
  %v580 = vadd.f32 0.0, %v579
  %v581 = vpop.f32.mrb[0].mxu0
  %v582 = vpop.f32.mrb[0].mxu0
  %v583 = vadd.f32 0.0, %v582
  %v584 = vpop.f32.mrb[0].mxu0
  %585 = vmatprep.mubr.bf16.mxu0 0
  %586 = vmatmul.mubr.bf16.gmra.mrb[0].mxu0 %v80
  %v587 = vpop.f32.mrb[0].mxu0
  %v588 = vadd.f32 0.0, %v587
  %v589 = vpop.f32.mrb[0].mxu0
  %v590 = vpop.f32.mrb[0].mxu0
  %v591 = vadd.f32 0.0, %v590
  %v592 = vpop.f32.mrb[0].mxu0
  %593 = vdwg.mxu0
  %v594 = vpack.c.bf16 %v583, %v580
  %v595 = vpack.c.bf16 %v591, %v588
  %596 = vmatprep.subr.bf16.mxu0 0
  %597 = vmatpush1.bf16.msra.mxu0 %v594
  %598 = vmatprep.subr.bf16.mxu0 0
  %599 = vmatpush1.bf16.msra.mxu0 %v595
  %600 = vmatprep.subr.bf16.mxu0 0
  %601 = vmatpush1.bf16.msra.mxu0 0
  %602 = vmatprep.subr.bf16.mxu0 0
  %603 = vmatpush1.bf16.msra.mxu0 0
  %604 = vmatprep.subr.bf16.mxu0 0
  %605 = vmatpush1.bf16.msra.mxu0 0
  %606 = vmatprep.subr.bf16.mxu0 0
  %607 = vmatpush1.bf16.msra.mxu0 0
  %608 = vmatprep.subr.bf16.mxu0 0
  %609 = vmatpush1.bf16.msra.mxu0 0
  %610 = vmatprep.subr.bf16.mxu0 0
  %611 = vmatpush1.bf16.msra.mxu0 0
  %612 = vmatprep.subr.bf16.mxu0 0
  %613 = vmatpush1.bf16.msra.mxu0 0
  %614 = vmatprep.subr.bf16.mxu0 0
  %615 = vmatpush1.bf16.msra.mxu0 0
  %616 = vmatprep.subr.bf16.mxu0 0
  %617 = vmatpush1.bf16.msra.mxu0 0
  %618 = vmatprep.subr.bf16.mxu0 0
  %619 = vmatpush1.bf16.msra.mxu0 0
  %620 = vmatprep.subr.bf16.mxu0 0
  %621 = vmatpush1.bf16.msra.mxu0 0
  %622 = vmatprep.subr.bf16.mxu0 0
  %623 = vmatpush1.bf16.msra.mxu0 0
  %624 = vmatprep.subr.bf16.mxu0 0
  %625 = vmatpush1.bf16.msra.mxu0 0
  %626 = vmatprep.subr.bf16.mxu0 0
  %627 = vmatpush1.bf16.msra.mxu0 0
  %628 = vmatprep.mubr.bf16.mxu0 0
  %629 = vmatmul.mubr.bf16.gmra.mrb[0].mxu0 %v77
  %v630 = vpop.f32.mrb[0].mxu0
  %v631 = vadd.f32 0.0, %v630
  %v632 = vpop.f32.mrb[0].mxu0
  %v633 = vpop.f32.mrb[0].mxu0
  %v634 = vadd.f32 0.0, %v633
  %v635 = vpop.f32.mrb[0].mxu0
  %636 = vmatprep.mubr.bf16.mxu0 0
  %637 = vmatmul.mubr.bf16.gmra.mrb[0].mxu0 %v80
  %v638 = vpop.f32.mrb[0].mxu0
  %v639 = vadd.f32 0.0, %v638
  %v640 = vpop.f32.mrb[0].mxu0
  %v641 = vpop.f32.mrb[0].mxu0
  %v642 = vadd.f32 0.0, %v641
  %v643 = vpop.f32.mrb[0].mxu0
  %644 = vdwg.mxu0
  %v645 = vmul.f32 %v631, 2.0
  %v646 = vmul.f32 %v634, 2.0
  %v647 = vmul.f32 %v639, 2.0
  %v648 = vmul.f32 %v642, 2.0
  %v649 = vsub.f32 %v645, %v539
  %v650 = vsub.f32 %v646, %v540
  %v651 = vsub.f32 %v647, %v541
  %v652 = vsub.f32 %v648, %v542
  %657 = vrot.lane.b32.xlu0 %v539, 3
  %v658 = vpop.permute.xlu0 %657
  %659 = vrot.lane.b32.xlu0 %v540, 3
  %v660 = vpop.permute.xlu0 %659
  %661 = vrot.lane.b32.xlu0 %v541, 3
  %v662 = vpop.permute.xlu0 %661
  %663 = vrot.lane.b32.xlu0 %v542, 3
  %v664 = vpop.permute.xlu0 %663
  %673 = vrot.lane.b32.xlu0 %v580, 35
  %v674 = vpop.permute.xlu0 %673
  %675 = vrot.lane.b32.xlu0 %v583, 35
  %v676 = vpop.permute.xlu0 %675
  %677 = vrot.lane.b32.xlu0 %v588, 35
  %v678 = vpop.permute.xlu0 %677
  %679 = vrot.lane.b32.xlu0 %v591, 35
  %v680 = vpop.permute.xlu0 %679
  %689 = vrot.lane.b32.xlu0 %v649, 67
  %v690 = vpop.permute.xlu0 %689
  %691 = vrot.lane.b32.xlu0 %v650, 67
  %v692 = vpop.permute.xlu0 %691
  %693 = vrot.lane.b32.xlu0 %v651, 67
  %v694 = vpop.permute.xlu0 %693
  %695 = vrot.lane.b32.xlu0 %v652, 67
  %v696 = vpop.permute.xlu0 %695
  %v701 = vsel %vm390, %v386, %v658
  %v702 = vsel %vm390, %v387, %v660
  %v703 = vsel %vm390, %v388, %v662
  %v704 = vsel %vm390, %v389, %v664
  %v705 = vsel %vm395, %v701, %v674
  %v706 = vsel %vm395, %v702, %v676
  %v707 = vsel %vm395, %v703, %v678
  %v708 = vsel %vm395, %v704, %v680
  %v709 = vsel %vm400, %v705, %v690
  %v710 = vsel %vm400, %v706, %v692
  %v711 = vsel %vm400, %v707, %v694
  %v712 = vsel %vm400, %v708, %v696
  %v713 = vpack.c.bf16 %v710, %v709
  %v714 = vpack.c.bf16 %v712, %v711
  %715 = vrot.lane.b32.xlu0 %v439, 64
  %v716 = vpop.permute.xlu0 %715
  %717 = vrot.lane.b32.xlu0 %v440, 64
  %v718 = vpop.permute.xlu0 %717
  %719 = vrot.lane.b32.xlu0 %v441, 64
  %v720 = vpop.permute.xlu0 %719
  %721 = vrot.lane.b32.xlu0 %v442, 64
  %v722 = vpop.permute.xlu0 %721
  %723 = vrot.lane.b32.xlu0 %v443, 64
  %v724 = vpop.permute.xlu0 %723
  %725 = vrot.lane.b32.xlu0 %v444, 64
  %v726 = vpop.permute.xlu0 %725
  %727 = vrot.lane.b32.xlu0 %v445, 64
  %v728 = vpop.permute.xlu0 %727
  %735 = vrot.lane.b32.xlu0 %v411, 64
  %v736 = vpop.permute.xlu0 %735
  %v739 = vsel %vm452, %v713, 0
  %v742 = vsel %vm452, %v714, 0
  %v745 = vand.u32 %v728, %v462
  %747 = vmatprep.subr.bf16.mxu0 0
  %748 = vmatpush1.bf16.msra.mxu0 %v716
  %749 = vmatprep.subr.bf16.mxu0 0
  %750 = vmatpush1.bf16.msra.mxu0 %v718
  %751 = vmatprep.subr.bf16.mxu0 0
  %752 = vmatpush1.bf16.msra.mxu0 %v720
  %753 = vmatprep.subr.bf16.mxu0 0
  %754 = vmatpush1.bf16.msra.mxu0 %v722
  %755 = vmatprep.subr.bf16.mxu0 0
  %756 = vmatpush1.bf16.msra.mxu0 %v724
  %757 = vmatprep.subr.bf16.mxu0 0
  %758 = vmatpush1.bf16.msra.mxu0 %v726
  %759 = vmatprep.subr.bf16.mxu0 0
  %760 = vmatpush1.bf16.msra.mxu0 %v745
  %761 = vmatprep.subr.bf16.mxu0 0
  %762 = vmatpush1.bf16.msra.mxu0 0
  %763 = vmatprep.subr.bf16.mxu0 0
  %764 = vmatpush1.bf16.msra.mxu0 0
  %765 = vmatprep.subr.bf16.mxu0 0
  %766 = vmatpush1.bf16.msra.mxu0 0
  %767 = vmatprep.subr.bf16.mxu0 0
  %768 = vmatpush1.bf16.msra.mxu0 0
  %769 = vmatprep.subr.bf16.mxu0 0
  %770 = vmatpush1.bf16.msra.mxu0 0
  %771 = vmatprep.subr.bf16.mxu0 0
  %772 = vmatpush1.bf16.msra.mxu0 0
  %773 = vmatprep.subr.bf16.mxu0 0
  %774 = vmatpush1.bf16.msra.mxu0 0
  %775 = vmatprep.subr.bf16.mxu0 0
  %776 = vmatpush1.bf16.msra.mxu0 0
  %777 = vmatprep.subr.bf16.mxu0 0
  %778 = vmatpush1.bf16.msra.mxu0 0
  %779 = vmatprep.mubr.bf16.mxu0 0
  %780 = vmatmul.mubr.bf16.gmra.mrb[0].mxu0 %v739
  %v781 = vpop.f32.mrb[0].mxu0
  %v782 = vadd.f32 %v736, %v781
  %v783 = vpop.f32.mrb[0].mxu0
  %v784 = vpop.f32.mrb[0].mxu0
  %v785 = vadd.f32 %v736, %v784
  %v786 = vpop.f32.mrb[0].mxu0
  %787 = vmatprep.mubr.bf16.mxu0 0
  %788 = vmatmul.mubr.bf16.gmra.mrb[0].mxu0 %v742
  %v789 = vpop.f32.mrb[0].mxu0
  %v790 = vadd.f32 %v736, %v789
  %v791 = vpop.f32.mrb[0].mxu0
  %v792 = vpop.f32.mrb[0].mxu0
  %v793 = vadd.f32 %v736, %v792
  %v794 = vpop.f32.mrb[0].mxu0
  %795 = vdwg.mxu0
  %v796 = vtanh.pop %v782
  %v797 = vtanh.pop %v785
  %v798 = vtanh.pop %v790
  %v799 = vtanh.pop %v793
  %800 = vrot.lane.b32.xlu0 %v45, 32
  %v801 = vpop.permute.xlu0 %800
  %802 = vrot.lane.b32.xlu0 %v46, 32
  %v803 = vpop.permute.xlu0 %802
  %804 = vrot.lane.b32.xlu0 %v47, 32
  %v805 = vpop.permute.xlu0 %804
  %806 = vrot.lane.b32.xlu0 %v48, 32
  %v807 = vpop.permute.xlu0 %806
  %v812 = vmul.f32 %v532, %v801
  %v813 = vmul.f32 %v534, %v803
  %v814 = vmul.f32 %v536, %v805
  %v815 = vmul.f32 %v538, %v807
  %v816 = vsub.f32 1.0, %v532
  %v817 = vsub.f32 1.0, %v534
  %v818 = vsub.f32 1.0, %v536
  %v819 = vsub.f32 1.0, %v538
  %824 = vrot.lane.b32.xlu0 %v796, 32
  %v825 = vpop.permute.xlu0 %824
  %826 = vrot.lane.b32.xlu0 %v797, 32
  %v827 = vpop.permute.xlu0 %826
  %828 = vrot.lane.b32.xlu0 %v798, 32
  %v829 = vpop.permute.xlu0 %828
  %830 = vrot.lane.b32.xlu0 %v799, 32
  %v831 = vpop.permute.xlu0 %830
  %v836 = vmul.f32 %v816, %v825
  %v837 = vmul.f32 %v817, %v827
  %v838 = vmul.f32 %v818, %v829
  %v839 = vmul.f32 %v819, %v831
  %v840 = vadd.f32 %v812, %v836
  %v841 = vadd.f32 %v813, %v837
  %v842 = vadd.f32 %v814, %v838
  %v843 = vadd.f32 %v815, %v839
  %v844 = vld [vmem:[%s5] sm:$0xf]
  %v845 = vld [vmem:[%s5 + $0x4] sm:$0xf]
  %v846 = vld [vmem:[%s5 + $0x8] sm:$0xf]
  %v847 = vld [vmem:[%s5 + $0xc] sm:$0xf]
  %v848 = vld [vmem:[%s5 + $0x10] sm:$0xf]
  %v849 = vld [vmem:[%s5 + $0x14] sm:$0xf]
  %v850 = vld [vmem:[%s5 + $0x18] sm:$0xf]
  %v851 = vld [vmem:[%s5 + $0x1c] sm:$0xf]
  %v852 = vld [vmem:[%s5 + $0x20] sm:$0xf]
  %v853 = vld [vmem:[%s5 + $0x24] sm:$0xf]
  %v854 = vld [vmem:[%s5 + $0x28] sm:$0xf]
  %v855 = vld [vmem:[%s5 + $0x2c] sm:$0xf]
  %v856 = vld [vmem:[%s5 + $0x30] sm:$0xf]
  %v857 = vld [vmem:[%s5 + $0x34] sm:$0xf]
  %v858 = vld [vmem:[%s5 + $0x38] sm:$0xf]
  %v859 = vld [vmem:[%s5 + $0x3c] sm:$0xf]
  %v860 = vld [vmem:[%s5 + $0x40] sm:$0xf]
  %v861 = vld [vmem:[%s5 + $0x44] sm:$0xf]
  %v862 = vld [vmem:[%s5 + $0x48] sm:$0xf]
  %v863 = vld [vmem:[%s5 + $0x4c] sm:$0xf]
  %v864 = vld [vmem:[%s5 + $0x50] sm:$0xf]
  %v865 = vld [vmem:[%s5 + $0x54] sm:$0xf]
  %v866 = vld [vmem:[%s5 + $0x58] sm:$0xf]
  %v867 = vld [vmem:[%s5 + $0x5c] sm:$0xf]
  %v868 = vld [vmem:[%s6] sm:$0x1]
  %v869 = vpack.c.bf16 %v841, %v840
  %v870 = vpack.c.bf16 %v843, %v842
  %873 = vrot.lane.b32.xlu0 %v869, 96
  %v874 = vpop.permute.xlu0 %873
  %875 = vrot.lane.b32.xlu0 %v870, 96
  %v876 = vpop.permute.xlu0 %875
  %879 = vmatprep.subr.bf16.mxu0 0
  %880 = vmatpush1.bf16.msra.mxu0 %v874
  %881 = vmatprep.subr.bf16.mxu0 0
  %882 = vmatpush1.bf16.msra.mxu0 %v876
  %883 = vmatprep.subr.bf16.mxu0 0
  %884 = vmatpush1.bf16.msra.mxu0 0
  %885 = vmatprep.subr.bf16.mxu0 0
  %886 = vmatpush1.bf16.msra.mxu0 0
  %887 = vmatprep.subr.bf16.mxu0 0
  %888 = vmatpush1.bf16.msra.mxu0 0
  %889 = vmatprep.subr.bf16.mxu0 0
  %890 = vmatpush1.bf16.msra.mxu0 0
  %891 = vmatprep.subr.bf16.mxu0 0
  %892 = vmatpush1.bf16.msra.mxu0 0
  %893 = vmatprep.subr.bf16.mxu0 0
  %894 = vmatpush1.bf16.msra.mxu0 0
  %895 = vmatprep.subr.bf16.mxu0 0
  %896 = vmatpush1.bf16.msra.mxu0 0
  %897 = vmatprep.subr.bf16.mxu0 0
  %898 = vmatpush1.bf16.msra.mxu0 0
  %899 = vmatprep.subr.bf16.mxu0 0
  %900 = vmatpush1.bf16.msra.mxu0 0
  %901 = vmatprep.subr.bf16.mxu0 0
  %902 = vmatpush1.bf16.msra.mxu0 0
  %903 = vmatprep.subr.bf16.mxu0 0
  %904 = vmatpush1.bf16.msra.mxu0 0
  %905 = vmatprep.subr.bf16.mxu0 0
  %906 = vmatpush1.bf16.msra.mxu0 0
  %907 = vmatprep.subr.bf16.mxu0 0
  %908 = vmatpush1.bf16.msra.mxu0 0
  %909 = vmatprep.subr.bf16.mxu0 0
  %910 = vmatpush1.bf16.msra.mxu0 0
  %911 = vmatprep.mubr.bf16.mxu0 0
  %912 = vmatmul.mubr.bf16.gmra.mrb[0].mxu0 %v77
  %v913 = vpop.f32.mrb[0].mxu0
  %v914 = vadd.f32 0.0, %v913
  %v915 = vpop.f32.mrb[0].mxu0
  %v916 = vpop.f32.mrb[0].mxu0
  %v917 = vadd.f32 0.0, %v916
  %v918 = vpop.f32.mrb[0].mxu0
  %919 = vmatprep.mubr.bf16.mxu0 0
  %920 = vmatmul.mubr.bf16.gmra.mrb[0].mxu0 %v80
  %v921 = vpop.f32.mrb[0].mxu0
  %v922 = vadd.f32 0.0, %v921
  %v923 = vpop.f32.mrb[0].mxu0
  %v924 = vpop.f32.mrb[0].mxu0
  %v925 = vadd.f32 0.0, %v924
  %v926 = vpop.f32.mrb[0].mxu0
  %927 = vdwg.mxu0
  %v928 = vpack.c.bf16 %v917, %v914
  %v929 = vpack.c.bf16 %v925, %v922
  %930 = vmatprep.subr.bf16.mxu0 0
  %931 = vmatpush1.bf16.msra.mxu0 %v928
  %932 = vmatprep.subr.bf16.mxu0 0
  %933 = vmatpush1.bf16.msra.mxu0 %v929
  %934 = vmatprep.subr.bf16.mxu0 0
  %935 = vmatpush1.bf16.msra.mxu0 0
  %936 = vmatprep.subr.bf16.mxu0 0
  %937 = vmatpush1.bf16.msra.mxu0 0
  %938 = vmatprep.subr.bf16.mxu0 0
  %939 = vmatpush1.bf16.msra.mxu0 0
  %940 = vmatprep.subr.bf16.mxu0 0
  %941 = vmatpush1.bf16.msra.mxu0 0
  %942 = vmatprep.subr.bf16.mxu0 0
  %943 = vmatpush1.bf16.msra.mxu0 0
  %944 = vmatprep.subr.bf16.mxu0 0
  %945 = vmatpush1.bf16.msra.mxu0 0
  %946 = vmatprep.subr.bf16.mxu0 0
  %947 = vmatpush1.bf16.msra.mxu0 0
  %948 = vmatprep.subr.bf16.mxu0 0
  %949 = vmatpush1.bf16.msra.mxu0 0
  %950 = vmatprep.subr.bf16.mxu0 0
  %951 = vmatpush1.bf16.msra.mxu0 0
  %952 = vmatprep.subr.bf16.mxu0 0
  %953 = vmatpush1.bf16.msra.mxu0 0
  %954 = vmatprep.subr.bf16.mxu0 0
  %955 = vmatpush1.bf16.msra.mxu0 0
  %956 = vmatprep.subr.bf16.mxu0 0
  %957 = vmatpush1.bf16.msra.mxu0 0
  %958 = vmatprep.subr.bf16.mxu0 0
  %959 = vmatpush1.bf16.msra.mxu0 0
  %960 = vmatprep.subr.bf16.mxu0 0
  %961 = vmatpush1.bf16.msra.mxu0 0
  %962 = vmatprep.mubr.bf16.mxu0 0
  %963 = vmatmul.mubr.bf16.gmra.mrb[0].mxu0 %v77
  %v964 = vpop.f32.mrb[0].mxu0
  %v965 = vadd.f32 0.0, %v964
  %v966 = vpop.f32.mrb[0].mxu0
  %v967 = vpop.f32.mrb[0].mxu0
  %v968 = vadd.f32 0.0, %v967
  %v969 = vpop.f32.mrb[0].mxu0
  %970 = vmatprep.mubr.bf16.mxu0 0
  %971 = vmatmul.mubr.bf16.gmra.mrb[0].mxu0 %v80
  %v972 = vpop.f32.mrb[0].mxu0
  %v973 = vadd.f32 0.0, %v972
  %v974 = vpop.f32.mrb[0].mxu0
  %v975 = vpop.f32.mrb[0].mxu0
  %v976 = vadd.f32 0.0, %v975
  %v977 = vpop.f32.mrb[0].mxu0
  %978 = vdwg.mxu0
  %v979 = vmul.f32 %v965, 2.0
  %v980 = vmul.f32 %v968, 2.0
  %v981 = vmul.f32 %v973, 2.0
  %v982 = vmul.f32 %v976, 2.0
  %987 = vrot.lane.b32.xlu0 %v840, 96
  %v988 = vpop.permute.xlu0 %987
  %989 = vrot.lane.b32.xlu0 %v841, 96
  %v990 = vpop.permute.xlu0 %989
  %991 = vrot.lane.b32.xlu0 %v842, 96
  %v992 = vpop.permute.xlu0 %991
  %993 = vrot.lane.b32.xlu0 %v843, 96
  %v994 = vpop.permute.xlu0 %993
  %v999 = vsub.f32 %v979, %v988
  %v1000 = vsub.f32 %v980, %v990
  %v1001 = vsub.f32 %v981, %v992
  %v1002 = vsub.f32 %v982, %v994
  %1005 = vrot.lane.b32.xlu0 %v190, 96
  %v1006 = vpop.permute.xlu0 %1005
  %1007 = vrot.lane.b32.xlu0 %v191, 96
  %v1008 = vpop.permute.xlu0 %1007
  %1011 = vmatprep.subr.bf16.mxu0 0
  %1012 = vmatpush1.bf16.msra.mxu0 %v1006
  %1013 = vmatprep.subr.bf16.mxu0 0
  %1014 = vmatpush1.bf16.msra.mxu0 %v1008
  %1015 = vmatprep.subr.bf16.mxu0 0
  %1016 = vmatpush1.bf16.msra.mxu0 0
  %1017 = vmatprep.subr.bf16.mxu0 0
  %1018 = vmatpush1.bf16.msra.mxu0 0
  %1019 = vmatprep.subr.bf16.mxu0 0
  %1020 = vmatpush1.bf16.msra.mxu0 0
  %1021 = vmatprep.subr.bf16.mxu0 0
  %1022 = vmatpush1.bf16.msra.mxu0 0
  %1023 = vmatprep.subr.bf16.mxu0 0
  %1024 = vmatpush1.bf16.msra.mxu0 0
  %1025 = vmatprep.subr.bf16.mxu0 0
  %1026 = vmatpush1.bf16.msra.mxu0 0
  %1027 = vmatprep.subr.bf16.mxu0 0
  %1028 = vmatpush1.bf16.msra.mxu0 0
  %1029 = vmatprep.subr.bf16.mxu0 0
  %1030 = vmatpush1.bf16.msra.mxu0 0
  %1031 = vmatprep.subr.bf16.mxu0 0
  %1032 = vmatpush1.bf16.msra.mxu0 0
  %1033 = vmatprep.subr.bf16.mxu0 0
  %1034 = vmatpush1.bf16.msra.mxu0 0
  %1035 = vmatprep.subr.bf16.mxu0 0
  %1036 = vmatpush1.bf16.msra.mxu0 0
  %1037 = vmatprep.subr.bf16.mxu0 0
  %1038 = vmatpush1.bf16.msra.mxu0 0
  %1039 = vmatprep.subr.bf16.mxu0 0
  %1040 = vmatpush1.bf16.msra.mxu0 0
  %1041 = vmatprep.subr.bf16.mxu0 0
  %1042 = vmatpush1.bf16.msra.mxu0 0
  %1043 = vmatprep.mubr.bf16.mxu0 0
  %1044 = vmatmul.mubr.bf16.gmra.mrb[0].mxu0 %v77
  %v1045 = vpop.f32.mrb[0].mxu0
  %v1046 = vadd.f32 0.0, %v1045
  %v1047 = vpop.f32.mrb[0].mxu0
  %v1048 = vpop.f32.mrb[0].mxu0
  %v1049 = vadd.f32 0.0, %v1048
  %v1050 = vpop.f32.mrb[0].mxu0
  %1051 = vmatprep.mubr.bf16.mxu0 0
  %1052 = vmatmul.mubr.bf16.gmra.mrb[0].mxu0 %v80
  %v1053 = vpop.f32.mrb[0].mxu0
  %v1054 = vadd.f32 0.0, %v1053
  %v1055 = vpop.f32.mrb[0].mxu0
  %v1056 = vpop.f32.mrb[0].mxu0
  %v1057 = vadd.f32 0.0, %v1056
  %v1058 = vpop.f32.mrb[0].mxu0
  %1059 = vdwg.mxu0
  %v1060 = vpack.c.bf16 %v1049, %v1046
  %v1061 = vpack.c.bf16 %v1057, %v1054
  %1062 = vmatprep.subr.bf16.mxu0 0
  %1063 = vmatpush1.bf16.msra.mxu0 %v1060
  %1064 = vmatprep.subr.bf16.mxu0 0
  %1065 = vmatpush1.bf16.msra.mxu0 %v1061
  %1066 = vmatprep.subr.bf16.mxu0 0
  %1067 = vmatpush1.bf16.msra.mxu0 0
  %1068 = vmatprep.subr.bf16.mxu0 0
  %1069 = vmatpush1.bf16.msra.mxu0 0
  %1070 = vmatprep.subr.bf16.mxu0 0
  %1071 = vmatpush1.bf16.msra.mxu0 0
  %1072 = vmatprep.subr.bf16.mxu0 0
  %1073 = vmatpush1.bf16.msra.mxu0 0
  %1074 = vmatprep.subr.bf16.mxu0 0
  %1075 = vmatpush1.bf16.msra.mxu0 0
  %1076 = vmatprep.subr.bf16.mxu0 0
  %1077 = vmatpush1.bf16.msra.mxu0 0
  %1078 = vmatprep.subr.bf16.mxu0 0
  %1079 = vmatpush1.bf16.msra.mxu0 0
  %1080 = vmatprep.subr.bf16.mxu0 0
  %1081 = vmatpush1.bf16.msra.mxu0 0
  %1082 = vmatprep.subr.bf16.mxu0 0
  %1083 = vmatpush1.bf16.msra.mxu0 0
  %1084 = vmatprep.subr.bf16.mxu0 0
  %1085 = vmatpush1.bf16.msra.mxu0 0
  %1086 = vmatprep.subr.bf16.mxu0 0
  %1087 = vmatpush1.bf16.msra.mxu0 0
  %1088 = vmatprep.subr.bf16.mxu0 0
  %1089 = vmatpush1.bf16.msra.mxu0 0
  %1090 = vmatprep.subr.bf16.mxu0 0
  %1091 = vmatpush1.bf16.msra.mxu0 0
  %1092 = vmatprep.subr.bf16.mxu0 0
  %1093 = vmatpush1.bf16.msra.mxu0 0
  %1094 = vmatprep.mubr.bf16.mxu0 0
  %1095 = vmatmul.mubr.bf16.gmra.mrb[0].mxu0 %v77
  %v1096 = vpop.f32.mrb[0].mxu0
  %v1097 = vadd.f32 0.0, %v1096
  %v1098 = vpop.f32.mrb[0].mxu0
  %v1099 = vpop.f32.mrb[0].mxu0
  %v1100 = vadd.f32 0.0, %v1099
  %v1101 = vpop.f32.mrb[0].mxu0
  %1102 = vmatprep.mubr.bf16.mxu0 0
  %1103 = vmatmul.mubr.bf16.gmra.mrb[0].mxu0 %v80
  %v1104 = vpop.f32.mrb[0].mxu0
  %v1105 = vadd.f32 0.0, %v1104
  %v1106 = vpop.f32.mrb[0].mxu0
  %v1107 = vpop.f32.mrb[0].mxu0
  %v1108 = vadd.f32 0.0, %v1107
  %v1109 = vpop.f32.mrb[0].mxu0
  %1110 = vdwg.mxu0
  %v1111 = vmul.f32 %v1097, 2.0
  %v1112 = vmul.f32 %v1100, 2.0
  %v1113 = vmul.f32 %v1105, 2.0
  %v1114 = vmul.f32 %v1108, 2.0
  %1115 = vrot.lane.b32.xlu0 %v45, 96
  %v1116 = vpop.permute.xlu0 %1115
  %1117 = vrot.lane.b32.xlu0 %v46, 96
  %v1118 = vpop.permute.xlu0 %1117
  %1119 = vrot.lane.b32.xlu0 %v47, 96
  %v1120 = vpop.permute.xlu0 %1119
  %1121 = vrot.lane.b32.xlu0 %v48, 96
  %v1122 = vpop.permute.xlu0 %1121
  %v1127 = vsub.f32 %v1111, %v1116
  %v1128 = vsub.f32 %v1112, %v1118
  %v1129 = vsub.f32 %v1113, %v1120
  %v1130 = vsub.f32 %v1114, %v1122
  %1135 = vrot.lane.b32.xlu0 %v914, 32
  %v1136 = vpop.permute.xlu0 %1135
  %1137 = vrot.lane.b32.xlu0 %v917, 32
  %v1138 = vpop.permute.xlu0 %1137
  %1139 = vrot.lane.b32.xlu0 %v922, 32
  %v1140 = vpop.permute.xlu0 %1139
  %1141 = vrot.lane.b32.xlu0 %v925, 32
  %v1142 = vpop.permute.xlu0 %1141
  %1151 = vrot.lane.b32.xlu0 %v999, 64
  %v1152 = vpop.permute.xlu0 %1151
  %1153 = vrot.lane.b32.xlu0 %v1000, 64
  %v1154 = vpop.permute.xlu0 %1153
  %1155 = vrot.lane.b32.xlu0 %v1001, 64
  %v1156 = vpop.permute.xlu0 %1155
  %1157 = vrot.lane.b32.xlu0 %v1002, 64
  %v1158 = vpop.permute.xlu0 %1157
  %1163 = vrot.lane.b32.xlu0 %v45, 64
  %v1164 = vpop.permute.xlu0 %1163
  %1165 = vrot.lane.b32.xlu0 %v46, 64
  %v1166 = vpop.permute.xlu0 %1165
  %1167 = vrot.lane.b32.xlu0 %v47, 64
  %v1168 = vpop.permute.xlu0 %1167
  %1169 = vrot.lane.b32.xlu0 %v48, 64
  %v1170 = vpop.permute.xlu0 %1169
  %1179 = vrot.lane.b32.xlu0 %v1127, 32
  %v1180 = vpop.permute.xlu0 %1179
  %1181 = vrot.lane.b32.xlu0 %v1128, 32
  %v1182 = vpop.permute.xlu0 %1181
  %1183 = vrot.lane.b32.xlu0 %v1129, 32
  %v1184 = vpop.permute.xlu0 %1183
  %1185 = vrot.lane.b32.xlu0 %v1130, 32
  %v1186 = vpop.permute.xlu0 %1185
  %v1191 = vsel %vm75, %v988, %v1136
  %v1192 = vsel %vm75, %v990, %v1138
  %v1193 = vsel %vm75, %v992, %v1140
  %v1194 = vsel %vm75, %v994, %v1142
  %vm1195 = vcmask 523264
  %v1196 = vsel %vm1195, %v1191, %v1152
  %v1197 = vsel %vm1195, %v1192, %v1154
  %v1198 = vsel %vm1195, %v1193, %v1156
  %v1199 = vsel %vm1195, %v1194, %v1158
  %vm1200 = vcmask 785408
  %v1201 = vsel %vm1200, %v1196, %v1164
  %v1202 = vsel %vm1200, %v1197, %v1166
  %v1203 = vsel %vm1200, %v1198, %v1168
  %v1204 = vsel %vm1200, %v1199, %v1170
  %v1205 = vsel %vm75, %v1046, %v1180
  %v1206 = vsel %vm75, %v1049, %v1182
  %v1207 = vsel %vm75, %v1054, %v1184
  %v1208 = vsel %vm75, %v1057, %v1186
  %v1209 = vpack.c.bf16 %v1202, %v1201
  %v1210 = vpack.c.bf16 %v1206, %v1205
  %v1211 = vpack.c.bf16 %v1204, %v1203
  %v1212 = vpack.c.bf16 %v1208, %v1207
  %v1214 = vlaneseq
  %v1215 = vshrl.u32 %v1214, 7
  %v1216 = vsub.s32 0, %v1215
  %v1217 = vrot.slane %v868, %v1216
  %v1243 = vunpack.c.l.b16 %v844
  %v1244 = vunpack.c.l.b16 %v845
  %v1245 = vunpack.c.l.b16 %v846
  %v1246 = vunpack.c.l.b16 %v847
  %v1247 = vunpack.c.l.b16 %v848
  %v1248 = vunpack.c.l.b16 %v849
  %v1249 = vunpack.c.l.b16 %v850
  %v1250 = vunpack.c.l.b16 %v851
  %v1251 = vunpack.c.l.b16 %v852
  %v1252 = vunpack.c.l.b16 %v853
  %v1253 = vunpack.c.l.b16 %v854
  %v1254 = vunpack.c.l.b16 %v855
  %v1255 = vunpack.c.l.b16 %v856
  %v1256 = vunpack.c.l.b16 %v857
  %v1257 = vunpack.c.l.b16 %v858
  %v1258 = vunpack.c.l.b16 %v859
  %v1259 = vunpack.c.l.b16 %v860
  %v1260 = vunpack.c.l.b16 %v861
  %v1261 = vunpack.c.l.b16 %v862
  %v1262 = vunpack.c.l.b16 %v863
  %v1263 = vunpack.c.l.b16 %v864
  %v1264 = vunpack.c.l.b16 %v865
  %v1265 = vunpack.c.l.b16 %v866
  %v1266 = vunpack.c.l.b16 %v867
  %v1267 = vpack.c.b16 %v1244, %v1243
  %v1268 = vpack.c.b16 %v1246, %v1245
  %v1269 = vpack.c.b16 %v1248, %v1247
  %v1270 = vpack.c.b16 %v1250, %v1249
  %v1271 = vpack.c.b16 %v1252, %v1251
  %v1272 = vpack.c.b16 %v1254, %v1253
  %v1273 = vpack.c.b16 %v1256, %v1255
  %v1274 = vpack.c.b16 %v1258, %v1257
  %v1275 = vpack.c.b16 %v1260, %v1259
  %v1276 = vpack.c.b16 %v1262, %v1261
  %v1277 = vpack.c.b16 %v1264, %v1263
  %v1278 = vpack.c.b16 %v1266, %v1265
  %v1292 = vsel %vm1195, %v1210, 0
  %v1295 = vsel %vm1195, %v1212, 0
  %1297 = vmatprep.subr.bf16.mxu0 0
  %1298 = vmatpush1.bf16.msra.mxu0 %v1267
  %1299 = vmatprep.subr.bf16.mxu0 0
  %1300 = vmatpush1.bf16.msra.mxu0 %v1268
  %1301 = vmatprep.subr.bf16.mxu0 0
  %1302 = vmatpush1.bf16.msra.mxu0 %v1269
  %1303 = vmatprep.subr.bf16.mxu0 0
  %1304 = vmatpush1.bf16.msra.mxu0 %v1270
  %1305 = vmatprep.subr.bf16.mxu0 0
  %1306 = vmatpush1.bf16.msra.mxu0 %v1271
  %1307 = vmatprep.subr.bf16.mxu0 0
  %1308 = vmatpush1.bf16.msra.mxu0 %v1272
  %1309 = vmatprep.subr.bf16.mxu0 0
  %1310 = vmatpush1.bf16.msra.mxu0 %v1273
  %1311 = vmatprep.subr.bf16.mxu0 0
  %1312 = vmatpush1.bf16.msra.mxu0 %v1274
  %1313 = vmatprep.subr.bf16.mxu0 0
  %1314 = vmatpush1.bf16.msra.mxu0 %v1275
  %1315 = vmatprep.subr.bf16.mxu0 0
  %1316 = vmatpush1.bf16.msra.mxu0 %v1276
  %1317 = vmatprep.subr.bf16.mxu0 0
  %1318 = vmatpush1.bf16.msra.mxu0 %v1277
  %1319 = vmatprep.subr.bf16.mxu0 0
  %1320 = vmatpush1.bf16.msra.mxu0 %v1278
  %1321 = vmatprep.subr.bf16.mxu0 0
  %1322 = vmatpush1.bf16.msra.mxu0 0
  %1323 = vmatprep.subr.bf16.mxu0 0
  %1324 = vmatpush1.bf16.msra.mxu0 0
  %1325 = vmatprep.subr.bf16.mxu0 0
  %1326 = vmatpush1.bf16.msra.mxu0 0
  %1327 = vmatprep.subr.bf16.mxu0 0
  %1328 = vmatpush1.bf16.msra.mxu0 0
  %1329 = vmatprep.mubr.bf16.mxu0 %v1292
  %1330 = vmatmul.mubr.bf16.gmra.mrb[0].mxu0 %v1209
  %v1331 = vpop.f32.mrb[0].mxu0
  %v1332 = vadd.f32 %v1217, %v1331
  %v1333 = vpop.f32.mrb[0].mxu0
  %v1334 = vpop.f32.mrb[0].mxu0
  %v1335 = vadd.f32 %v1217, %v1334
  %v1336 = vpop.f32.mrb[0].mxu0
  %1337 = vmatprep.mubr.bf16.mxu0 %v1295
  %1338 = vmatmul.mubr.bf16.gmra.mrb[0].mxu0 %v1211
  %v1339 = vpop.f32.mrb[0].mxu0
  %v1340 = vadd.f32 %v1217, %v1339
  %v1341 = vpop.f32.mrb[0].mxu0
  %v1342 = vpop.f32.mrb[0].mxu0
  %v1343 = vadd.f32 %v1217, %v1342
  %v1344 = vpop.f32.mrb[0].mxu0
  %1345 = vdwg.mxu0
  %v1346 = vxor.u32 %v1332, 2147483648
  %v1347 = vxor.u32 %v1335, 2147483648
  %v1348 = vxor.u32 %v1340, 2147483648
  %v1349 = vxor.u32 %v1343, 2147483648
  %v1350 = vmul.f32 %v1346, 1.442695
  %v1351 = vpow.pop %v1350
  %v1352 = vmul.f32 %v1347, 1.442695
  %v1353 = vpow.pop %v1352
  %v1354 = vmul.f32 %v1348, 1.442695
  %v1355 = vpow.pop %v1354
  %v1356 = vmul.f32 %v1349, 1.442695
  %v1357 = vpow.pop %v1356
  %v1358 = vadd.f32 %v1351, 1.0
  %v1359 = vadd.f32 %v1353, 1.0
  %v1360 = vadd.f32 %v1355, 1.0
  %v1361 = vadd.f32 %v1357, 1.0
  %v1362 = vrcp.pop %v1358
  %v1363 = vmul.f32 1.0, %v1362
  %v1364 = vrcp.pop %v1359
  %v1365 = vmul.f32 1.0, %v1364
  %v1366 = vrcp.pop %v1360
  %v1367 = vmul.f32 1.0, %v1366
  %v1368 = vrcp.pop %v1361
  %v1369 = vmul.f32 1.0, %v1368
  %v1370 = vmul.f32 %v1363, %v1116
  %v1371 = vmul.f32 %v1365, %v1118
  %v1372 = vmul.f32 %v1367, %v1120
  %v1373 = vmul.f32 %v1369, %v1122
  %v1374 = vpack.c.bf16 %v1371, %v1370
  %v1375 = vpack.c.bf16 %v1373, %v1372
  %1376 = vmatprep.subr.bf16.mxu0 0
  %1377 = vmatpush1.bf16.msra.mxu0 %v1374
  %1378 = vmatprep.subr.bf16.mxu0 0
  %1379 = vmatpush1.bf16.msra.mxu0 %v1375
  %1380 = vmatprep.subr.bf16.mxu0 0
  %1381 = vmatpush1.bf16.msra.mxu0 0
  %1382 = vmatprep.subr.bf16.mxu0 0
  %1383 = vmatpush1.bf16.msra.mxu0 0
  %1384 = vmatprep.subr.bf16.mxu0 0
  %1385 = vmatpush1.bf16.msra.mxu0 0
  %1386 = vmatprep.subr.bf16.mxu0 0
  %1387 = vmatpush1.bf16.msra.mxu0 0
  %1388 = vmatprep.subr.bf16.mxu0 0
  %1389 = vmatpush1.bf16.msra.mxu0 0
  %1390 = vmatprep.subr.bf16.mxu0 0
  %1391 = vmatpush1.bf16.msra.mxu0 0
  %1392 = vmatprep.subr.bf16.mxu0 0
  %1393 = vmatpush1.bf16.msra.mxu0 0
  %1394 = vmatprep.subr.bf16.mxu0 0
  %1395 = vmatpush1.bf16.msra.mxu0 0
  %1396 = vmatprep.subr.bf16.mxu0 0
  %1397 = vmatpush1.bf16.msra.mxu0 0
  %1398 = vmatprep.subr.bf16.mxu0 0
  %1399 = vmatpush1.bf16.msra.mxu0 0
  %1400 = vmatprep.subr.bf16.mxu0 0
  %1401 = vmatpush1.bf16.msra.mxu0 0
  %1402 = vmatprep.subr.bf16.mxu0 0
  %1403 = vmatpush1.bf16.msra.mxu0 0
  %1404 = vmatprep.subr.bf16.mxu0 0
  %1405 = vmatpush1.bf16.msra.mxu0 0
  %1406 = vmatprep.subr.bf16.mxu0 0
  %1407 = vmatpush1.bf16.msra.mxu0 0
  %1408 = vmatprep.mubr.bf16.mxu0 0
  %1409 = vmatmul.mubr.bf16.gmra.mrb[0].mxu0 %v77
  %v1410 = vpop.f32.mrb[0].mxu0
  %v1411 = vadd.f32 0.0, %v1410
  %v1412 = vpop.f32.mrb[0].mxu0
  %v1413 = vpop.f32.mrb[0].mxu0
  %v1414 = vadd.f32 0.0, %v1413
  %v1415 = vpop.f32.mrb[0].mxu0
  %1416 = vmatprep.mubr.bf16.mxu0 0
  %1417 = vmatmul.mubr.bf16.gmra.mrb[0].mxu0 %v80
  %v1418 = vpop.f32.mrb[0].mxu0
  %v1419 = vadd.f32 0.0, %v1418
  %v1420 = vpop.f32.mrb[0].mxu0
  %v1421 = vpop.f32.mrb[0].mxu0
  %v1422 = vadd.f32 0.0, %v1421
  %v1423 = vpop.f32.mrb[0].mxu0
  %1424 = vdwg.mxu0
  %v1425 = vpack.c.bf16 %v1414, %v1411
  %v1426 = vpack.c.bf16 %v1422, %v1419
  %1427 = vmatprep.subr.bf16.mxu0 0
  %1428 = vmatpush1.bf16.msra.mxu0 %v1425
  %1429 = vmatprep.subr.bf16.mxu0 0
  %1430 = vmatpush1.bf16.msra.mxu0 %v1426
  %1431 = vmatprep.subr.bf16.mxu0 0
  %1432 = vmatpush1.bf16.msra.mxu0 0
  %1433 = vmatprep.subr.bf16.mxu0 0
  %1434 = vmatpush1.bf16.msra.mxu0 0
  %1435 = vmatprep.subr.bf16.mxu0 0
  %1436 = vmatpush1.bf16.msra.mxu0 0
  %1437 = vmatprep.subr.bf16.mxu0 0
  %1438 = vmatpush1.bf16.msra.mxu0 0
  %1439 = vmatprep.subr.bf16.mxu0 0
  %1440 = vmatpush1.bf16.msra.mxu0 0
  %1441 = vmatprep.subr.bf16.mxu0 0
  %1442 = vmatpush1.bf16.msra.mxu0 0
  %1443 = vmatprep.subr.bf16.mxu0 0
  %1444 = vmatpush1.bf16.msra.mxu0 0
  %1445 = vmatprep.subr.bf16.mxu0 0
  %1446 = vmatpush1.bf16.msra.mxu0 0
  %1447 = vmatprep.subr.bf16.mxu0 0
  %1448 = vmatpush1.bf16.msra.mxu0 0
  %1449 = vmatprep.subr.bf16.mxu0 0
  %1450 = vmatpush1.bf16.msra.mxu0 0
  %1451 = vmatprep.subr.bf16.mxu0 0
  %1452 = vmatpush1.bf16.msra.mxu0 0
  %1453 = vmatprep.subr.bf16.mxu0 0
  %1454 = vmatpush1.bf16.msra.mxu0 0
  %1455 = vmatprep.subr.bf16.mxu0 0
  %1456 = vmatpush1.bf16.msra.mxu0 0
  %1457 = vmatprep.subr.bf16.mxu0 0
  %1458 = vmatpush1.bf16.msra.mxu0 0
  %1459 = vmatprep.mubr.bf16.mxu0 0
  %1460 = vmatmul.mubr.bf16.gmra.mrb[0].mxu0 %v77
  %v1461 = vpop.f32.mrb[0].mxu0
  %v1462 = vadd.f32 0.0, %v1461
  %v1463 = vpop.f32.mrb[0].mxu0
  %v1464 = vpop.f32.mrb[0].mxu0
  %v1465 = vadd.f32 0.0, %v1464
  %v1466 = vpop.f32.mrb[0].mxu0
  %1467 = vmatprep.mubr.bf16.mxu0 0
  %1468 = vmatmul.mubr.bf16.gmra.mrb[0].mxu0 %v80
  %v1469 = vpop.f32.mrb[0].mxu0
  %v1470 = vadd.f32 0.0, %v1469
  %v1471 = vpop.f32.mrb[0].mxu0
  %v1472 = vpop.f32.mrb[0].mxu0
  %v1473 = vadd.f32 0.0, %v1472
  %v1474 = vpop.f32.mrb[0].mxu0
  %1475 = vdwg.mxu0
  %v1476 = vmul.f32 %v1462, 2.0
  %v1477 = vmul.f32 %v1465, 2.0
  %v1478 = vmul.f32 %v1470, 2.0
  %v1479 = vmul.f32 %v1473, 2.0
  %v1480 = vsub.f32 %v1476, %v1370
  %v1481 = vsub.f32 %v1477, %v1371
  %v1482 = vsub.f32 %v1478, %v1372
  %v1483 = vsub.f32 %v1479, %v1373
  %1488 = vrot.lane.b32.xlu0 %v1370, 96
  %v1489 = vpop.permute.xlu0 %1488
  %1490 = vrot.lane.b32.xlu0 %v1371, 96
  %v1491 = vpop.permute.xlu0 %1490
  %1492 = vrot.lane.b32.xlu0 %v1372, 96
  %v1493 = vpop.permute.xlu0 %1492
  %1494 = vrot.lane.b32.xlu0 %v1373, 96
  %v1495 = vpop.permute.xlu0 %1494
  %1504 = vrot.lane.b32.xlu0 %v1480, 32
  %v1505 = vpop.permute.xlu0 %1504
  %1506 = vrot.lane.b32.xlu0 %v1481, 32
  %v1507 = vpop.permute.xlu0 %1506
  %1508 = vrot.lane.b32.xlu0 %v1482, 32
  %v1509 = vpop.permute.xlu0 %1508
  %1510 = vrot.lane.b32.xlu0 %v1483, 32
  %v1511 = vpop.permute.xlu0 %1510
  %v1516 = vsel %vm1200, %v1196, %v1489
  %v1517 = vsel %vm1200, %v1197, %v1491
  %v1518 = vsel %vm1200, %v1198, %v1493
  %v1519 = vsel %vm1200, %v1199, %v1495
  %v1520 = vsel %vm75, %v1411, %v1505
  %v1521 = vsel %vm75, %v1414, %v1507
  %v1522 = vsel %vm75, %v1419, %v1509
  %v1523 = vsel %vm75, %v1422, %v1511
  %v1524 = vpack.c.bf16 %v1517, %v1516
  %v1525 = vpack.c.bf16 %v1521, %v1520
  %v1526 = vpack.c.bf16 %v1519, %v1518
  %v1527 = vpack.c.bf16 %v1523, %v1522
  %1528 = vrot.lane.b32.xlu0 %v1267, 64
  %v1529 = vpop.permute.xlu0 %1528
  %1530 = vrot.lane.b32.xlu0 %v1268, 64
  %v1531 = vpop.permute.xlu0 %1530
  %1532 = vrot.lane.b32.xlu0 %v1269, 64
  %v1533 = vpop.permute.xlu0 %1532
  %1534 = vrot.lane.b32.xlu0 %v1270, 64
  %v1535 = vpop.permute.xlu0 %1534
  %1536 = vrot.lane.b32.xlu0 %v1271, 64
  %v1537 = vpop.permute.xlu0 %1536
  %1538 = vrot.lane.b32.xlu0 %v1272, 64
  %v1539 = vpop.permute.xlu0 %1538
  %1540 = vrot.lane.b32.xlu0 %v1273, 64
  %v1541 = vpop.permute.xlu0 %1540
  %1542 = vrot.lane.b32.xlu0 %v1274, 64
  %v1543 = vpop.permute.xlu0 %1542
  %1544 = vrot.lane.b32.xlu0 %v1275, 64
  %v1545 = vpop.permute.xlu0 %1544
  %1546 = vrot.lane.b32.xlu0 %v1276, 64
  %v1547 = vpop.permute.xlu0 %1546
  %1548 = vrot.lane.b32.xlu0 %v1277, 64
  %v1549 = vpop.permute.xlu0 %1548
  %1550 = vrot.lane.b32.xlu0 %v1278, 64
  %v1551 = vpop.permute.xlu0 %1550
  %1564 = vrot.lane.b32.xlu0 %v1217, 64
  %v1565 = vpop.permute.xlu0 %1564
  %v1568 = vsel %vm1195, %v1525, 0
  %v1571 = vsel %vm1195, %v1527, 0
  %1573 = vmatprep.subr.bf16.mxu0 0
  %1574 = vmatpush1.bf16.msra.mxu0 %v1529
  %1575 = vmatprep.subr.bf16.mxu0 0
  %1576 = vmatpush1.bf16.msra.mxu0 %v1531
  %1577 = vmatprep.subr.bf16.mxu0 0
  %1578 = vmatpush1.bf16.msra.mxu0 %v1533
  %1579 = vmatprep.subr.bf16.mxu0 0
  %1580 = vmatpush1.bf16.msra.mxu0 %v1535
  %1581 = vmatprep.subr.bf16.mxu0 0
  %1582 = vmatpush1.bf16.msra.mxu0 %v1537
  %1583 = vmatprep.subr.bf16.mxu0 0
  %1584 = vmatpush1.bf16.msra.mxu0 %v1539
  %1585 = vmatprep.subr.bf16.mxu0 0
  %1586 = vmatpush1.bf16.msra.mxu0 %v1541
  %1587 = vmatprep.subr.bf16.mxu0 0
  %1588 = vmatpush1.bf16.msra.mxu0 %v1543
  %1589 = vmatprep.subr.bf16.mxu0 0
  %1590 = vmatpush1.bf16.msra.mxu0 %v1545
  %1591 = vmatprep.subr.bf16.mxu0 0
  %1592 = vmatpush1.bf16.msra.mxu0 %v1547
  %1593 = vmatprep.subr.bf16.mxu0 0
  %1594 = vmatpush1.bf16.msra.mxu0 %v1549
  %1595 = vmatprep.subr.bf16.mxu0 0
  %1596 = vmatpush1.bf16.msra.mxu0 %v1551
  %1597 = vmatprep.subr.bf16.mxu0 0
  %1598 = vmatpush1.bf16.msra.mxu0 0
  %1599 = vmatprep.subr.bf16.mxu0 0
  %1600 = vmatpush1.bf16.msra.mxu0 0
  %1601 = vmatprep.subr.bf16.mxu0 0
  %1602 = vmatpush1.bf16.msra.mxu0 0
  %1603 = vmatprep.subr.bf16.mxu0 0
  %1604 = vmatpush1.bf16.msra.mxu0 0
  %1605 = vmatprep.mubr.bf16.mxu0 %v1568
  %1606 = vmatmul.mubr.bf16.gmra.mrb[0].mxu0 %v1524
  %v1607 = vpop.f32.mrb[0].mxu0
  %v1608 = vadd.f32 %v1565, %v1607
  %v1609 = vpop.f32.mrb[0].mxu0
  %v1610 = vpop.f32.mrb[0].mxu0
  %v1611 = vadd.f32 %v1565, %v1610
  %v1612 = vpop.f32.mrb[0].mxu0
  %1613 = vmatprep.mubr.bf16.mxu0 %v1571
  %1614 = vmatmul.mubr.bf16.gmra.mrb[0].mxu0 %v1526
  %v1615 = vpop.f32.mrb[0].mxu0
  %v1616 = vadd.f32 %v1565, %v1615
  %v1617 = vpop.f32.mrb[0].mxu0
  %v1618 = vpop.f32.mrb[0].mxu0
  %v1619 = vadd.f32 %v1565, %v1618
  %v1620 = vpop.f32.mrb[0].mxu0
  %1621 = vdwg.mxu0
  %v1622 = vtanh.pop %v1608
  %v1623 = vtanh.pop %v1611
  %v1624 = vtanh.pop %v1616
  %v1625 = vtanh.pop %v1619
  %v1626 = vmul.f32 %v1363, %v45
  %v1627 = vmul.f32 %v1365, %v46
  %v1628 = vmul.f32 %v1367, %v47
  %v1629 = vmul.f32 %v1369, %v48
  %v1630 = vsub.f32 1.0, %v1363
  %v1631 = vsub.f32 1.0, %v1365
  %v1632 = vsub.f32 1.0, %v1367
  %v1633 = vsub.f32 1.0, %v1369
  %1638 = vrot.lane.b32.xlu0 %v1622, 32
  %v1639 = vpop.permute.xlu0 %1638
  %1640 = vrot.lane.b32.xlu0 %v1623, 32
  %v1641 = vpop.permute.xlu0 %1640
  %1642 = vrot.lane.b32.xlu0 %v1624, 32
  %v1643 = vpop.permute.xlu0 %1642
  %1644 = vrot.lane.b32.xlu0 %v1625, 32
  %v1645 = vpop.permute.xlu0 %1644
  %v1650 = vmul.f32 %v1630, %v1639
  %v1651 = vmul.f32 %v1631, %v1641
  %v1652 = vmul.f32 %v1632, %v1643
  %v1653 = vmul.f32 %v1633, %v1645
  %v1654 = vadd.f32 %v1626, %v1650
  %v1655 = vadd.f32 %v1627, %v1651
  %v1656 = vadd.f32 %v1628, %v1652
  %v1657 = vadd.f32 %v1629, %v1653
  %v1658 = vsel %vm75, %v988, %v1654
  %v1659 = vsel %vm75, %v990, %v1655
  %v1660 = vsel %vm75, %v992, %v1656
  %v1661 = vsel %vm75, %v994, %v1657
  %1662 = vst.msk [vmem:[%s10] sm:$0xff] %vm1195, %v1658
  %1663 = vst.msk [vmem:[%s10 + $0x8] sm:$0xff] %vm1195, %v1659
  %1664 = vst.msk [vmem:[%s10 + $0x10] sm:$0xff] %vm1195, %v1660
  %1665 = vst.msk [vmem:[%s10 + $0x18] sm:$0xff] %vm1195, %v1661
  %v1666 = vpack.c.bf16 %v1655, %v1654
  %v1667 = vpack.c.bf16 %v1657, %v1656
  %v1668 = vld [vmem:[%s7] sm:$0xf]
  %v1669 = vld [vmem:[%s7 + $0x4] sm:$0xf]
  %v1670 = vld [vmem:[%s7 + $0x8] sm:$0xf]
  %v1671 = vld [vmem:[%s7 + $0xc] sm:$0xf]
  %v1672 = vld [vmem:[#allocation2] sm:$0x1]
  %v1674 = vlaneseq
  %v1675 = vshrl.u32 %v1674, 7
  %v1676 = vsub.s32 0, %v1675
  %v1677 = vrot.slane %v1672, %v1676
  %1681 = vrot.lane.b32.xlu0 %v1666, 96
  %v1682 = vpop.permute.xlu0 %1681
  %1683 = vrot.lane.b32.xlu0 %v1667, 96
  %v1684 = vpop.permute.xlu0 %1683
  %v1689 = vunpack.c.l.b16 %v1668
  %v1690 = vunpack.c.l.b16 %v1669
  %v1691 = vunpack.c.l.b16 %v1670
  %v1692 = vunpack.c.l.b16 %v1671
  %v1693 = vpack.c.b16 %v1690, %v1689
  %v1694 = vpack.c.b16 %v1692, %v1691
  %v1698 = vsel %vm75, %v1682, 0
  %v1701 = vsel %vm75, %v1684, 0
  %1703 = vmatprep.subr.bf16.mxu0 0
  %1704 = vmatpush1.bf16.msra.mxu0 %v1693
  %1705 = vmatprep.subr.bf16.mxu0 0
  %1706 = vmatpush1.bf16.msra.mxu0 %v1694
  %1707 = vmatprep.subr.bf16.mxu0 0
  %1708 = vmatpush1.bf16.msra.mxu0 0
  %1709 = vmatprep.subr.bf16.mxu0 0
  %1710 = vmatpush1.bf16.msra.mxu0 0
  %1711 = vmatprep.subr.bf16.mxu0 0
  %1712 = vmatpush1.bf16.msra.mxu0 0
  %1713 = vmatprep.subr.bf16.mxu0 0
  %1714 = vmatpush1.bf16.msra.mxu0 0
  %1715 = vmatprep.subr.bf16.mxu0 0
  %1716 = vmatpush1.bf16.msra.mxu0 0
  %1717 = vmatprep.subr.bf16.mxu0 0
  %1718 = vmatpush1.bf16.msra.mxu0 0
  %1719 = vmatprep.subr.bf16.mxu0 0
  %1720 = vmatpush1.bf16.msra.mxu0 0
  %1721 = vmatprep.subr.bf16.mxu0 0
  %1722 = vmatpush1.bf16.msra.mxu0 0
  %1723 = vmatprep.subr.bf16.mxu0 0
  %1724 = vmatpush1.bf16.msra.mxu0 0
  %1725 = vmatprep.subr.bf16.mxu0 0
  %1726 = vmatpush1.bf16.msra.mxu0 0
  %1727 = vmatprep.subr.bf16.mxu0 0
  %1728 = vmatpush1.bf16.msra.mxu0 0
  %1729 = vmatprep.subr.bf16.mxu0 0
  %1730 = vmatpush1.bf16.msra.mxu0 0
  %1731 = vmatprep.subr.bf16.mxu0 0
  %1732 = vmatpush1.bf16.msra.mxu0 0
  %1733 = vmatprep.subr.bf16.mxu0 0
  %1734 = vmatpush1.bf16.msra.mxu0 0
  %1735 = vmatprep.mubr.bf16.mxu0 0
  %1736 = vmatmul.mubr.bf16.gmra.mrb[0].mxu0 %v1698
  %v1737 = vpop.f32.mrb[0].mxu0
  %v1738 = vadd.f32 %v1677, %v1737
  %v1739 = vpop.f32.mrb[0].mxu0
  %v1740 = vpop.f32.mrb[0].mxu0
  %v1741 = vadd.f32 %v1677, %v1740
  %v1742 = vpop.f32.mrb[0].mxu0
  %1743 = vmatprep.mubr.bf16.mxu0 0
  %1744 = vmatmul.mubr.bf16.gmra.mrb[0].mxu0 %v1701
  %v1745 = vpop.f32.mrb[0].mxu0
  %v1746 = vadd.f32 %v1677, %v1745
  %v1747 = vpop.f32.mrb[0].mxu0
  %v1748 = vpop.f32.mrb[0].mxu0
  %v1749 = vadd.f32 %v1677, %v1748
  %v1750 = vpop.f32.mrb[0].mxu0
  %1751 = vdwg.mxu0
  %1752 = vst.msk [vmem:[%s9] sm:$0xff] %vm380, %v1738
  %1753 = vst.msk [vmem:[%s9 + $0x8] sm:$0xff] %vm380, %v1741
  %1754 = vst.msk [vmem:[%s9 + $0x10] sm:$0xff] %vm380, %v1746
  %1755 = vst.msk [vmem:[%s9 + $0x18] sm:$0xff] %vm380, %v1749
  // Predicated region
  $region38: #{_forward_impl.1} parent=0 // pred_check
    _
  $region39: #{_forward_impl.1} parent=0 // pred_check_branch
    %1757 = sbr.rel (0) target = $region41
  $region40: #{_forward_impl.1} parent=0 // pred_region
    _
  $region41: #{_forward_impl.1} parent=0 // pred_fallthru
    _
  // Predicated region
  $region42: #{_forward_impl.1} parent=0 // pred_check
    _
  $region43: #{_forward_impl.1} parent=0 // pred_check_branch
    %1759 = sbr.rel (0) target = $region45
  $region44: #{_forward_impl.1} parent=0 // pred_region
    _
  $region45: #{_forward_impl.1} parent=0 // pred_fallthru
    _
  // Predicated region
  $region46: #{_forward_impl.1} parent=0 // pred_check
    _
  $region47: #{_forward_impl.1} parent=0 // pred_check_branch
    %1761 = sbr.rel (0) target = $region49
  $region48: #{_forward_impl.1} parent=0 // pred_region
    _
  $region49: #{_forward_impl.1} parent=0 // pred_fallthru
    _
  // Predicated region
  $region50: #{_forward_impl.1} parent=0 // pred_check
    _
  $region51: #{_forward_impl.1} parent=0 // pred_check_branch
    %1763 = sbr.rel (0) target = $region53
  $region52: #{_forward_impl.1} parent=0 // pred_region
    _
  $region53: #{_forward_impl.1} parent=0 // pred_fallthru
    _

</llo_original>
